<compile_context>
chip_gen: v7x
topology: tpu7x:2x2x1
jax: 0.10.0
libtpu: 0.0.40
codegen_flags: <defaults>
</compile_context>

<pallas_src>
import jax
import jax.numpy as jnp
from jax.experimental import pallas as pl
from jax.experimental.pallas import tpu as pltpu


def mlp_kernel(x_ref, w1_ref, b1_ref, w2_ref, b2_ref, w3_ref, b3_ref, o_ref):
    # Layer 1: Linear (bf16 operands, f32 accumulate) + bias + ReLU in f32.
    h1 = jnp.dot(x_ref[...], w1_ref[...], preferred_element_type=jnp.float32)
    h1 = jnp.maximum(h1 + b1_ref[...], 0.0)
    # Layer 2: Linear + ReLU.
    h2 = jnp.dot(h1.astype(w2_ref.dtype), w2_ref[...],
                 preferred_element_type=jnp.float32)
    h2 = jnp.maximum(h2 + b2_ref[...], 0.0)
    # Output head (padded to 128 lanes): Linear.
    out = jnp.dot(h2.astype(w3_ref.dtype), w3_ref[...],
                  preferred_element_type=jnp.float32) + b3_ref[...]
    o_ref[...] = out.astype(o_ref.dtype)


def _round_up(x, m):
    return (x + m - 1) // m * m


def mlp_classifier_forward(x, params, *, tile_b=256):
    """x: (B, input_dim) float32. params: dict of (in, out) weights + (1, out) biases."""
    B, D = x.shape
    w1, b1, w2, b2, w3, b3 = (params[k] for k in ("w1", "b1", "w2", "b2", "w3", "b3"))
    H1 = w1.shape[1]
    H2 = w2.shape[1]
    C = w3.shape[1]

    # Lane-dense head: pad num_classes to a multiple of 128 with zero columns.
    C_pad = _round_up(max(C, 128), 128)
    if C_pad != C:
        w3 = jnp.pad(w3, ((0, 0), (0, C_pad - C)))
        b3 = jnp.pad(b3, ((0, 0), (0, C_pad - C)))

    # Batch tile sized for the MXU; clamp for small batches, pad rows to a multiple.
    tile_b = max(8, min(tile_b, _round_up(B, 8)))
    B_pad = _round_up(B, tile_b)
    if B_pad != B:
        x = jnp.pad(x, ((0, B_pad - B), (0, 0)))

    # bf16 operands for the bf16-native MXU; accumulation stays f32 in-kernel.
    xb = x.astype(jnp.bfloat16)
    w1b = w1.astype(jnp.bfloat16)
    w2b = w2.astype(jnp.bfloat16)
    w3b = w3.astype(jnp.bfloat16)

    grid = (B_pad // tile_b,)
    full = lambda i: (0, 0)  # weights/biases: same full block every grid step

    flops = 2 * B_pad * (D * H1 + H1 * H2 + H2 * C_pad)
    bytes_accessed = (
        xb.size * 2 + w1b.size * 2 + w2b.size * 2 + w3b.size * 2
        + (b1.size + b2.size + b3.size) * 4 + B_pad * C_pad * 4
    )

    out = pl.pallas_call(
        mlp_kernel,
        out_shape=jax.ShapeDtypeStruct((B_pad, C_pad), jnp.float32),
        grid_spec=pltpu.PrefetchScalarGridSpec(
            num_scalar_prefetch=0,
            grid=grid,
            in_specs=[
                pl.BlockSpec((tile_b, D), lambda i: (i, 0)),   # x tile (bf16)
                pl.BlockSpec((D, H1), full),                   # W1 (in, out) bf16
                pl.BlockSpec((1, H1), full),                   # b1 f32
                pl.BlockSpec((H1, H2), full),                  # W2 bf16
                pl.BlockSpec((1, H2), full),                   # b2 f32
                pl.BlockSpec((H2, C_pad), full),               # W3 bf16 (lane-padded)
                pl.BlockSpec((1, C_pad), full),                # b3 f32 (lane-padded)
            ],
            out_specs=pl.BlockSpec((tile_b, C_pad), lambda i: (i, 0)),
        ),
        compiler_params=pltpu.CompilerParams(
            dimension_semantics=("parallel",),
            vmem_limit_bytes=48 << 20,
        ),
        cost_estimate=pl.CostEstimate(
            flops=flops, transcendentals=0, bytes_accessed=bytes_accessed
        ),
    )(xb, w1b, b1, w2b, b2, w3b, b3)

    # Strip batch / class padding.
    return out[:B, :C]


def init_params(key, input_dim, hidden_dims=(512, 256), num_classes=2):
    """Deterministic init. Weights stored as (in, out) = PyTorch weight.T."""
    dims = [input_dim, *hidden_dims, num_classes]
    params = {}
    for idx in range(len(dims) - 1):
        fan_in, fan_out = dims[idx], dims[idx + 1]
        key, kw, kb = jax.random.split(key, 3)
        bound = 1.0 / jnp.sqrt(fan_in)
        # matches torch.nn.Linear default: U(-1/sqrt(fan_in), 1/sqrt(fan_in))
        w = jax.random.uniform(kw, (fan_in, fan_out), jnp.float32, -bound, bound)
        b = jax.random.uniform(kb, (1, fan_out), jnp.float32, -bound, bound)
        params[f"w{idx + 1}"] = w
        params[f"b{idx + 1}"] = b
    return params


def mlp_reference_f32(x, params):
    h = jnp.maximum(x @ params["w1"] + params["b1"], 0.0)
    h = jnp.maximum(h @ params["w2"] + params["b2"], 0.0)
    return h @ params["w3"] + params["b3"]


def mlp_reference_bf16(x, params):
    """Same bf16-operand / f32-accumulate recipe as the kernel, in plain XLA."""
    bf = jnp.bfloat16
    h = jnp.dot(x.astype(bf), params["w1"].astype(bf),
                preferred_element_type=jnp.float32) + params["b1"]
    h = jnp.maximum(h, 0.0)
    h = jnp.dot(h.astype(bf), params["w2"].astype(bf),
                preferred_element_type=jnp.float32) + params["b2"]
    h = jnp.maximum(h, 0.0)
    return jnp.dot(h.astype(bf), params["w3"].astype(bf),
                   preferred_element_type=jnp.float32) + params["b3"]


if __name__ == "__main__":
    key = jax.random.PRNGKey(0)
    k_x, k_p = jax.random.split(key)

    batch = 256          # with tile_b=128 -> grid (2,): both v7x TensorCores get work
    input_dim = 32
    hidden_dims = (512, 256)
    num_classes = 2

    x = jax.random.normal(k_x, (batch, input_dim), jnp.float32)
    params = init_params(k_p, input_dim, hidden_dims, num_classes)

    out = mlp_classifier_forward(x, params, tile_b=128)
    out = jax.block_until_ready(out)
    assert out.shape == (batch, num_classes)
    assert out.dtype == jnp.float32

    # Tight check vs. an XLA reference using the identical bf16/f32 recipe.
    ref_bf16 = mlp_reference_bf16(x, params)
    assert jnp.allclose(out, ref_bf16, atol=2e-3, rtol=2e-3)

    # Loose check vs. the full-f32 PyTorch-equivalent reference (bf16 rounding).
    ref_f32 = mlp_reference_f32(x, params)
    assert jnp.allclose(out, ref_f32, atol=5e-2, rtol=5e-2)

    print("KERNEL_OK")
</pallas_src>

<mosaic_0001>
module attributes {stable_mosaic.version = 11 : i64} {
  func.func @mlp_kernel(%arg0: i32, %arg1: memref<128x32xbf16, #tpu.memory_space<vmem>>, %arg2: memref<32x512xbf16, #tpu.memory_space<vmem>>, %arg3: memref<1x512xf32, #tpu.memory_space<vmem>>, %arg4: memref<512x256xbf16, #tpu.memory_space<vmem>>, %arg5: memref<1x256xf32, #tpu.memory_space<vmem>>, %arg6: memref<256x128xbf16, #tpu.memory_space<vmem>>, %arg7: memref<1x128xf32, #tpu.memory_space<vmem>>, %arg8: memref<128x128xf32, #tpu.memory_space<vmem>>) attributes {dimension_semantics = [#tpu.dimension_semantics<parallel>], iteration_bounds = array<i64: 2>, scalar_prefetch = 0 : i64, scratch_operands = 0 : i64, tpu.core_type = #tpu.core_type<tc>, window_params = [{transform_indices = @transform_0, window_bounds = array<i64: 128, 32>}, {pipeline_mode = #tpu.pipeline_mode<synchronous>, transform_indices = @transform_1, window_bounds = array<i64: 32, 512>}, {pipeline_mode = #tpu.pipeline_mode<synchronous>, transform_indices = @transform_2, window_bounds = array<i64: 1, 512>}, {pipeline_mode = #tpu.pipeline_mode<synchronous>, transform_indices = @transform_3, window_bounds = array<i64: 512, 256>}, {pipeline_mode = #tpu.pipeline_mode<synchronous>, transform_indices = @transform_4, window_bounds = array<i64: 1, 256>}, {pipeline_mode = #tpu.pipeline_mode<synchronous>, transform_indices = @transform_5, window_bounds = array<i64: 256, 128>}, {pipeline_mode = #tpu.pipeline_mode<synchronous>, transform_indices = @transform_6, window_bounds = array<i64: 1, 128>}, {transform_indices = @transform_7, window_bounds = array<i64: 128, 128>}]} {
    %c0 = arith.constant 0 : index
    %c0_0 = arith.constant 0 : index
    %0 = vector.load %arg1[%c0, %c0_0] : memref<128x32xbf16, #tpu.memory_space<vmem>>, vector<128x32xbf16>
    %c0_1 = arith.constant 0 : index
    %c0_2 = arith.constant 0 : index
    %1 = vector.load %arg2[%c0_1, %c0_2] : memref<32x512xbf16, #tpu.memory_space<vmem>>, vector<32x512xbf16>
    %cst = arith.constant dense<0.000000e+00> : vector<128x512xf32>
    %2 = tpu.matmul %0, %1, %cst {dimension_numbers = #tpu.dot_dimension_numbers<[1], [0], [0], [1], [0, 0, 1, 1], [], []>} : vector<128x32xbf16>, vector<32x512xbf16>, vector<128x512xf32> -> vector<128x512xf32>
    %c0_3 = arith.constant 0 : index
    %c0_4 = arith.constant 0 : index
    %3 = vector.load %arg3[%c0_3, %c0_4] : memref<1x512xf32, #tpu.memory_space<vmem>>, vector<1x512xf32>
    %4 = vector.broadcast %3 : vector<1x512xf32> to vector<128x512xf32>
    %5 = arith.addf %2, %4 : vector<128x512xf32>
    %cst_5 = arith.constant 0.000000e+00 : f32
    %6 = vector.broadcast %cst_5 : f32 to vector<128x512xf32>
    %7 = arith.maximumf %5, %6 : vector<128x512xf32>
    %8 = arith.truncf %7 : vector<128x512xf32> to vector<128x512xbf16>
    %c0_6 = arith.constant 0 : index
    %c0_7 = arith.constant 0 : index
    %9 = vector.load %arg4[%c0_6, %c0_7] : memref<512x256xbf16, #tpu.memory_space<vmem>>, vector<512x256xbf16>
    %cst_8 = arith.constant dense<0.000000e+00> : vector<128x256xf32>
    %10 = tpu.matmul %8, %9, %cst_8 {dimension_numbers = #tpu.dot_dimension_numbers<[1], [0], [0], [1], [0, 0, 1, 1], [], []>} : vector<128x512xbf16>, vector<512x256xbf16>, vector<128x256xf32> -> vector<128x256xf32>
    %c0_9 = arith.constant 0 : index
    %c0_10 = arith.constant 0 : index
    %11 = vector.load %arg5[%c0_9, %c0_10] : memref<1x256xf32, #tpu.memory_space<vmem>>, vector<1x256xf32>
    %12 = vector.broadcast %11 : vector<1x256xf32> to vector<128x256xf32>
    %13 = arith.addf %10, %12 : vector<128x256xf32>
    %cst_11 = arith.constant 0.000000e+00 : f32
    %14 = vector.broadcast %cst_11 : f32 to vector<128x256xf32>
    %15 = arith.maximumf %13, %14 : vector<128x256xf32>
    %16 = arith.truncf %15 : vector<128x256xf32> to vector<128x256xbf16>
    %c0_12 = arith.constant 0 : index
    %c0_13 = arith.constant 0 : index
    %17 = vector.load %arg6[%c0_12, %c0_13] : memref<256x128xbf16, #tpu.memory_space<vmem>>, vector<256x128xbf16>
    %cst_14 = arith.constant dense<0.000000e+00> : vector<128x128xf32>
    %18 = tpu.matmul %16, %17, %cst_14 {dimension_numbers = #tpu.dot_dimension_numbers<[1], [0], [0], [1], [0, 0, 1, 1], [], []>} : vector<128x256xbf16>, vector<256x128xbf16>, vector<128x128xf32> -> vector<128x128xf32>
    %c0_15 = arith.constant 0 : index
    %c0_16 = arith.constant 0 : index
    %19 = vector.load %arg7[%c0_15, %c0_16] : memref<1x128xf32, #tpu.memory_space<vmem>>, vector<1x128xf32>
    %20 = vector.broadcast %19 : vector<1x128xf32> to vector<128x128xf32>
    %21 = arith.addf %18, %20 : vector<128x128xf32>
    %c0_17 = arith.constant 0 : index
    %c0_18 = arith.constant 0 : index
    %22 = vector.load %arg8[%c0_17, %c0_18] : memref<128x128xf32, #tpu.memory_space<vmem>>, vector<128x128xf32>
    tpu.vector_store %arg8[%c0_17, %c0_18], %21 {strides = array<i32>} : memref<128x128xf32, #tpu.memory_space<vmem>>, vector<128x128xf32>,
    return
  }
  func.func @transform_0(%arg0: i32) -> (i32, i32) {
    %c0_i32 = arith.constant 0 : i32
    %c0_i32_0 = arith.constant 0 : i32
    return %arg0, %c0_i32 : i32, i32
  }
  func.func @transform_1(%arg0: i32) -> (i32, i32) {
    %c0_i32 = arith.constant 0 : i32
    %c0_i32_0 = arith.constant 0 : i32
    %c0_i32_1 = arith.constant 0 : i32
    return %c0_i32, %c0_i32_0 : i32, i32
  }
  func.func @transform_2(%arg0: i32) -> (i32, i32) {
    %c0_i32 = arith.constant 0 : i32
    %c0_i32_0 = arith.constant 0 : i32
    %c0_i32_1 = arith.constant 0 : i32
    return %c0_i32, %c0_i32_0 : i32, i32
  }
  func.func @transform_3(%arg0: i32) -> (i32, i32) {
    %c0_i32 = arith.constant 0 : i32
    %c0_i32_0 = arith.constant 0 : i32
    %c0_i32_1 = arith.constant 0 : i32
    return %c0_i32, %c0_i32_0 : i32, i32
  }
  func.func @transform_4(%arg0: i32) -> (i32, i32) {
    %c0_i32 = arith.constant 0 : i32
    %c0_i32_0 = arith.constant 0 : i32
    %c0_i32_1 = arith.constant 0 : i32
    return %c0_i32, %c0_i32_0 : i32, i32
  }
  func.func @transform_5(%arg0: i32) -> (i32, i32) {
    %c0_i32 = arith.constant 0 : i32
    %c0_i32_0 = arith.constant 0 : i32
    %c0_i32_1 = arith.constant 0 : i32
    return %c0_i32, %c0_i32_0 : i32, i32
  }
  func.func @transform_6(%arg0: i32) -> (i32, i32) {
    %c0_i32 = arith.constant 0 : i32
    %c0_i32_0 = arith.constant 0 : i32
    %c0_i32_1 = arith.constant 0 : i32
    return %c0_i32, %c0_i32_0 : i32, i32
  }
  func.func @transform_7(%arg0: i32) -> (i32, i32) {
    %c0_i32 = arith.constant 0 : i32
    %c0_i32_0 = arith.constant 0 : i32
    return %arg0, %c0_i32 : i32, i32
  }
}

</mosaic_0001>

<llo_original>
// kernel: tpu_custom_call.1
$region0: #{tpu_custom_call.1}
  #allocation0 [shape = 'u32[]', space=smem, size = 0x4, offset = 0x4, fixed_abs, tag = 'smem constant byte address 0x4 - core index']
  #allocation1 [shape = 'u32[144,128]{1,0:T(1,128)}', space=vmem, size = 0x12000, scoped, tag = 'internal scratch']
  %s0 = inlined_call_operand.vmem [shape: bf16[256,32], index: 0, kind: input, shape index: {}]
  %s1 = inlined_call_operand.hbm [shape: bf16[32,512], index: 1, kind: input, shape index: {}]
  %s2 = inlined_call_operand.vmem [shape: f32[1,512], index: 2, kind: input, shape index: {}]
  %s3 = inlined_call_operand.hbm [shape: bf16[512,256], index: 3, kind: input, shape index: {}]
  %s4 = inlined_call_operand.vmem [shape: f32[1,256], index: 4, kind: input, shape index: {}]
  %s5 = inlined_call_operand.vmem [shape: bf16[256,128], index: 5, kind: input, shape index: {}]
  %s6 = inlined_call_operand.vmem [shape: f32[1,128], index: 6, kind: input, shape index: {}]
  %s7 = inlined_call_operand.hbm [shape: f32[256,128], index: 7, kind: output, shape index: {}]
  %s8 = sld [smem:[#allocation0]]
  $region69: #{tpu_custom_call.1} parent=0
    _
  %s10 = ssub.s32 1, %s8
  %s11 = scalar_select 0, %s10, %s8
  $region1: #{tpu_custom_call.1} parent=0
    #allocation2 [shape = 'u8[32768]{0}', space=vmem, size = 0x8000, scoped, tag = 'input window, operand 1, single buffered']
    #allocation3 [shape = 's32[2]{0}', space=sflag, size = 0x8, scoped, tag = 'scoped memory for tpu_custom_call.1']
    #allocation4 [shape = 's32[2]{0}', space=sflag, size = 0x8, scoped, tag = 'scoped memory for tpu_custom_call.1']
    #allocation5 [shape = 'u8[262144]{0}', space=vmem, size = 0x40000, scoped, tag = 'input window, operand 3, single buffered']
    #allocation6 [shape = 's32[1]{0}', space=sflag, size = 0x4, scoped, tag = 'scoped memory for tpu_custom_call.1']
    #allocation7 [shape = 'u8[131072]{0}', space=vmem, size = 0x20000, scoped, tag = 'output window, operand 0']
    %12 = vsyncpa [#allocation3], 0
    %13 = vsyncpa [#allocation6], 0
    %14 = vsyncpa [#allocation4], 0
    %s15 = scalar_lea.sflag [#allocation4], 1
    %16 = vsyncpa %s15, 0
    loop: start=0, step=1, limit=4
    $region2: #{tpu_custom_call.1} parent=1 // loop_pre_header
      _
    $region3: #{tpu_custom_call.1} parent=1 // loop_header
      %s18 = sphi 0, %s22
      %p19 = scmp.ge.s32.totalorder %s18, 4
      %s28 = sphi 0, %s30
      %s31 = sphi 0, %s28
      %s32 = sphi 0, %s31
      %s48 = sphi 0, %s32
      %s52 = sphi 0, %s52
      %s54 = sphi 0, %s52
      %s55 = sphi 0, %s54
      %s69 = sphi 0, %s55
      %s73 = sphi 0, %s73
      %s75 = sphi 0, %s73
      %s76 = sphi 0, %s75
      %s90 = sphi 0, %s76
      %s94 = sphi 0, %s94
      %s96 = sphi 0, %s94
      %s97 = sphi 0, %s96
      %s111 = sphi 0, %s97
      %s115 = sphi 0, %s115
      %s117 = sphi 0, %s115
      %s118 = sphi 0, %s117
      %s132 = sphi 0, %s118
      %s136 = sphi 0, %s136
      %s138 = sphi 0, %s136
      %s139 = sphi 0, %s138
      %s153 = sphi 0, %s139
      %s157 = sphi 0, %s157
      %s159 = sphi 0, %s157
      %s160 = sphi 0, %s159
      %s174 = sphi 0, %s160
      %s180 = sphi 0, %s182
      %s183 = sphi 0, %s180
      %s184 = sphi 0, %s183
      %s200 = sphi 0, %s184
    $region4: #{tpu_custom_call.1} parent=1 // loop_header_branch
      %21 = sbr.rel (%p19) target = $region8
    $region5: #{tpu_custom_call.1} parent=1 // loop_body
      %s23 = ssub.s32 %s18, 1
      %s24 = ssub.s32 %s18, 2
      %s25 = sadd.s32 %s18, 1
      %s26 = ssub.s32 %s18, %s25
      %p27 = scmp.eq.s32.totalorder %s26, 0
      %s29 = sadd.s32 %s28, 1
      %s30 = scalar_select %p27, %s28, %s29
      %p33 = pneg %p27
      %p34 = scmp.eq.s32.totalorder %s18, 1
      %p35 = por %p33, %p34
      %p36 = scmp.ne.s32.totalorder %s28, %s31
      %p37 = scmp.eq.s32.totalorder %s18, 0
      %p38 = por %p36, %p37
      %p39 = scmp.ne.s32.totalorder %s28, %s31
      %p40 = scmp.eq.s32.totalorder %s23, 1
      %p41 = por %p39, %p40
      %p42 = scmp.ne.s32.totalorder %s31, %s32
      %p43 = scmp.eq.s32.totalorder %s23, 0
      %p44 = por %p42, %p43
      %p45 = scmp.ne.s32.totalorder %s31, %s32
      %p46 = scmp.eq.s32.totalorder %s24, 1
      %p47 = por %p45, %p46
      %p49 = scmp.ne.s32.totalorder %s32, %s48
      %p50 = scmp.eq.s32.totalorder %s24, 0
      %p51 = por %p49, %p50
      %s53 = sadd.s32 %s52, 1
      %p56 = scmp.eq.s32.totalorder %s18, 1
      %p57 = scmp.ne.s32.totalorder %s52, %s54
      %p58 = scmp.eq.s32.totalorder %s18, 0
      %p59 = por %p57, %p58
      %p60 = scmp.ne.s32.totalorder %s52, %s54
      %p61 = scmp.eq.s32.totalorder %s23, 1
      %p62 = por %p60, %p61
      %p63 = scmp.ne.s32.totalorder %s54, %s55
      %p64 = scmp.eq.s32.totalorder %s23, 0
      %p65 = por %p63, %p64
      %p66 = scmp.ne.s32.totalorder %s54, %s55
      %p67 = scmp.eq.s32.totalorder %s24, 1
      %p68 = por %p66, %p67
      %p70 = scmp.ne.s32.totalorder %s55, %s69
      %p71 = scmp.eq.s32.totalorder %s24, 0
      %p72 = por %p70, %p71
      %s74 = sadd.s32 %s73, 1
      %p77 = scmp.eq.s32.totalorder %s18, 1
      %p78 = scmp.ne.s32.totalorder %s73, %s75
      %p79 = scmp.eq.s32.totalorder %s18, 0
      %p80 = por %p78, %p79
      %p81 = scmp.ne.s32.totalorder %s73, %s75
      %p82 = scmp.eq.s32.totalorder %s23, 1
      %p83 = por %p81, %p82
      %p84 = scmp.ne.s32.totalorder %s75, %s76
      %p85 = scmp.eq.s32.totalorder %s23, 0
      %p86 = por %p84, %p85
      %p87 = scmp.ne.s32.totalorder %s75, %s76
      %p88 = scmp.eq.s32.totalorder %s24, 1
      %p89 = por %p87, %p88
      %p91 = scmp.ne.s32.totalorder %s76, %s90
      %p92 = scmp.eq.s32.totalorder %s24, 0
      %p93 = por %p91, %p92
      %s95 = sadd.s32 %s94, 1
      %p98 = scmp.eq.s32.totalorder %s18, 1
      %p99 = scmp.ne.s32.totalorder %s94, %s96
      %p100 = scmp.eq.s32.totalorder %s18, 0
      %p101 = por %p99, %p100
      %p102 = scmp.ne.s32.totalorder %s94, %s96
      %p103 = scmp.eq.s32.totalorder %s23, 1
      %p104 = por %p102, %p103
      %p105 = scmp.ne.s32.totalorder %s96, %s97
      %p106 = scmp.eq.s32.totalorder %s23, 0
      %p107 = por %p105, %p106
      %p108 = scmp.ne.s32.totalorder %s96, %s97
      %p109 = scmp.eq.s32.totalorder %s24, 1
      %p110 = por %p108, %p109
      %p112 = scmp.ne.s32.totalorder %s97, %s111
      %p113 = scmp.eq.s32.totalorder %s24, 0
      %p114 = por %p112, %p113
      %s116 = sadd.s32 %s115, 1
      %p119 = scmp.eq.s32.totalorder %s18, 1
      %p120 = scmp.ne.s32.totalorder %s115, %s117
      %p121 = scmp.eq.s32.totalorder %s18, 0
      %p122 = por %p120, %p121
      %p123 = scmp.ne.s32.totalorder %s115, %s117
      %p124 = scmp.eq.s32.totalorder %s23, 1
      %p125 = por %p123, %p124
      %p126 = scmp.ne.s32.totalorder %s117, %s118
      %p127 = scmp.eq.s32.totalorder %s23, 0
      %p128 = por %p126, %p127
      %p129 = scmp.ne.s32.totalorder %s117, %s118
      %p130 = scmp.eq.s32.totalorder %s24, 1
      %p131 = por %p129, %p130
      %p133 = scmp.ne.s32.totalorder %s118, %s132
      %p134 = scmp.eq.s32.totalorder %s24, 0
      %p135 = por %p133, %p134
      %s137 = sadd.s32 %s136, 1
      %p140 = scmp.eq.s32.totalorder %s18, 1
      %p141 = scmp.ne.s32.totalorder %s136, %s138
      %p142 = scmp.eq.s32.totalorder %s18, 0
      %p143 = por %p141, %p142
      %p144 = scmp.ne.s32.totalorder %s136, %s138
      %p145 = scmp.eq.s32.totalorder %s23, 1
      %p146 = por %p144, %p145
      %p147 = scmp.ne.s32.totalorder %s138, %s139
      %p148 = scmp.eq.s32.totalorder %s23, 0
      %p149 = por %p147, %p148
      %p150 = scmp.ne.s32.totalorder %s138, %s139
      %p151 = scmp.eq.s32.totalorder %s24, 1
      %p152 = por %p150, %p151
      %p154 = scmp.ne.s32.totalorder %s139, %s153
      %p155 = scmp.eq.s32.totalorder %s24, 0
      %p156 = por %p154, %p155
      %s158 = sadd.s32 %s157, 1
      %p161 = scmp.eq.s32.totalorder %s18, 1
      %p162 = scmp.ne.s32.totalorder %s157, %s159
      %p163 = scmp.eq.s32.totalorder %s18, 0
      %p164 = por %p162, %p163
      %p165 = scmp.ne.s32.totalorder %s157, %s159
      %p166 = scmp.eq.s32.totalorder %s23, 1
      %p167 = por %p165, %p166
      %p168 = scmp.ne.s32.totalorder %s159, %s160
      %p169 = scmp.eq.s32.totalorder %s23, 0
      %p170 = por %p168, %p169
      %p171 = scmp.ne.s32.totalorder %s159, %s160
      %p172 = scmp.eq.s32.totalorder %s24, 1
      %p173 = por %p171, %p172
      %p175 = scmp.ne.s32.totalorder %s160, %s174
      %p176 = scmp.eq.s32.totalorder %s24, 0
      %p177 = por %p175, %p176
      %s178 = ssub.s32 %s18, %s25
      %p179 = scmp.eq.s32.totalorder %s178, 0
      %s181 = sadd.s32 %s180, 1
      %s182 = scalar_select %p179, %s180, %s181
      %p185 = pneg %p179
      %p186 = scmp.eq.s32.totalorder %s18, 1
      %p187 = por %p185, %p186
      %p188 = scmp.ne.s32.totalorder %s180, %s183
      %p189 = scmp.eq.s32.totalorder %s18, 0
      %p190 = por %p188, %p189
      %p191 = scmp.ne.s32.totalorder %s180, %s183
      %p192 = scmp.eq.s32.totalorder %s23, 1
      %p193 = por %p191, %p192
      %p194 = scmp.ne.s32.totalorder %s183, %s184
      %p195 = scmp.eq.s32.totalorder %s23, 0
      %p196 = por %p194, %p195
      %p197 = scmp.ne.s32.totalorder %s183, %s184
      %p198 = scmp.eq.s32.totalorder %s24, 1
      %p199 = por %p197, %p198
      %p201 = scmp.ne.s32.totalorder %s184, %s200
      %p202 = scmp.eq.s32.totalorder %s24, 0
      %p203 = por %p201, %p202
      %p204 = scmp.le.s32.totalorder 1, %s18
      %p205 = scmp.lt.s32.totalorder %s18, 3
      %p206 = pnand %p204, %p205
      %p207 = pneg %p206
      // Predicated region
      $region9: #{tpu_custom_call.1} parent=5 // pred_check
        _
      $region10: #{tpu_custom_call.1} parent=5 // pred_check_branch
        %209 = sbr.rel (%p206) target = $region12
      $region11: #{tpu_custom_call.1} parent=5 // pred_region
        %s210 = ssub.s32 %s18, 1
        // Predicated region
        $region13: #{tpu_custom_call.1} parent=11 // pred_check
          %p211 = pneg %p65
        $region14: #{tpu_custom_call.1} parent=11 // pred_check_branch
          %213 = sbr.rel (%p211) target = $region16
        $region15: #{tpu_custom_call.1} parent=11 // pred_region
          %s215 = ssub.s32 1024, 1024
          %216 = vsyncadd [#allocation3], %s215
          %s217 = sshll.u32 [#allocation2], 4
          %s218 = int_to_ptr.vmem [resolvable:$true] %s217
          %223 = dma.hbm_to_vmem [thread:$0]  %s1, 1024, %s218, [#allocation3], 256, 256, 16
        $region16: #{tpu_custom_call.1} parent=11 // pred_fallthru
          _
        // Predicated region
        $region17: #{tpu_custom_call.1} parent=11 // pred_check
          %p224 = pneg %p86
        $region18: #{tpu_custom_call.1} parent=11 // pred_check_branch
          %226 = sbr.rel (%p224) target = $region20
        $region19: #{tpu_custom_call.1} parent=11 // pred_region
          _
        $region20: #{tpu_custom_call.1} parent=11 // pred_fallthru
          _
        // Predicated region
        $region21: #{tpu_custom_call.1} parent=11 // pred_check
          %p227 = pneg %p107
        $region22: #{tpu_custom_call.1} parent=11 // pred_check_branch
          %229 = sbr.rel (%p227) target = $region24
        $region23: #{tpu_custom_call.1} parent=11 // pred_region
          %s231 = ssub.s32 8192, 8192
          %232 = vsyncadd [#allocation6], %s231
          %s233 = sshll.u32 [#allocation5], 4
          %s234 = int_to_ptr.vmem [resolvable:$true] %s233
          %239 = dma.hbm_to_vmem [thread:$0]  %s3, 8192, %s234, [#allocation6], 128, 128, 8
        $region24: #{tpu_custom_call.1} parent=11 // pred_fallthru
          _
        // Predicated region
        $region25: #{tpu_custom_call.1} parent=11 // pred_check
          %p240 = pneg %p128
        $region26: #{tpu_custom_call.1} parent=11 // pred_check_branch
          %242 = sbr.rel (%p240) target = $region28
        $region27: #{tpu_custom_call.1} parent=11 // pred_region
          _
        $region28: #{tpu_custom_call.1} parent=11 // pred_fallthru
          _
        // Predicated region
        $region29: #{tpu_custom_call.1} parent=11 // pred_check
          %p243 = pneg %p149
        $region30: #{tpu_custom_call.1} parent=11 // pred_check_branch
          %245 = sbr.rel (%p243) target = $region32
        $region31: #{tpu_custom_call.1} parent=11 // pred_region
          _
        $region32: #{tpu_custom_call.1} parent=11 // pred_fallthru
          _
        // Predicated region
        $region33: #{tpu_custom_call.1} parent=11 // pred_check
          %p246 = pneg %p170
        $region34: #{tpu_custom_call.1} parent=11 // pred_check_branch
          %248 = sbr.rel (%p246) target = $region36
        $region35: #{tpu_custom_call.1} parent=11 // pred_region
          _
        $region36: #{tpu_custom_call.1} parent=11 // pred_fallthru
          _
      $region12: #{tpu_custom_call.1} parent=5 // pred_fallthru
        _
      %p249 = scmp.lt.s32.totalorder %s18, 2
      // Predicated region
      $region37: #{tpu_custom_call.1} parent=5 // pred_check
        %p250 = pneg %p249
      $region38: #{tpu_custom_call.1} parent=5 // pred_check_branch
        %252 = sbr.rel (%p250) target = $region40
      $region39: #{tpu_custom_call.1} parent=5 // pred_region
        // Predicated region
        $region41: #{tpu_custom_call.1} parent=39 // pred_check
          %p253 = pneg %p38
        $region42: #{tpu_custom_call.1} parent=39 // pred_check_branch
          %255 = sbr.rel (%p253) target = $region44
        $region43: #{tpu_custom_call.1} parent=39 // pred_region
          %s256 = smul.u32 16, %s18
          %p257 = scmp.lt.s32.totalorder %s256, 31
          %s258 = scalar_select %p257, %s256, 31
          %s259 = smul.addr %s258, 4
          %s260 = scalar_lea.vmem %s0, %s259
          %s261 = smul.u32 16, %s18
        $region44: #{tpu_custom_call.1} parent=39 // pred_fallthru
          _
      $region40: #{tpu_custom_call.1} parent=5 // pred_fallthru
        _
      %p262 = scmp.le.s32.totalorder 1, %s18
      %p263 = scmp.lt.s32.totalorder %s18, 3
      %p264 = pnand %p262, %p263
      %p265 = pneg %p264
      // Predicated region
      $region45: #{tpu_custom_call.1} parent=5 // pred_check
        _
      $region46: #{tpu_custom_call.1} parent=5 // pred_check_branch
        %267 = sbr.rel (%p264) target = $region48
      $region47: #{tpu_custom_call.1} parent=5 // pred_region
        %s268 = ssub.s32 %s18, 1
        // Predicated region
        $region49: #{tpu_custom_call.1} parent=47 // pred_check
          %p269 = pneg %p65
        $region50: #{tpu_custom_call.1} parent=47 // pred_check_branch
          %271 = sbr.rel (%p269) target = $region52
        $region51: #{tpu_custom_call.1} parent=47 // pred_region
          %272 = dma.done [#allocation3], 1024
        $region52: #{tpu_custom_call.1} parent=47 // pred_fallthru
          _
        // Predicated region
        $region53: #{tpu_custom_call.1} parent=47 // pred_check
          %p273 = pneg %p107
        $region54: #{tpu_custom_call.1} parent=47 // pred_check_branch
          %275 = sbr.rel (%p273) target = $region56
        $region55: #{tpu_custom_call.1} parent=47 // pred_region
          %276 = dma.done [#allocation6], 8192
        $region56: #{tpu_custom_call.1} parent=47 // pred_fallthru
          _
        %s277 = smul.u32 16, %s23
        %p278 = scmp.lt.s32.totalorder %s277, 31
        %s279 = scalar_select %p278, %s277, 31
        %s280 = smul.addr %s279, 4
        %s281 = scalar_lea.vmem %s0, %s280
        %p282 = pneg %p44
        %p283 = pneg %p41
        %p284 = pneg %p65
        %p285 = pneg %p62
        %p286 = pneg %p86
        %p287 = pneg %p83
        %p288 = pneg %p107
        %p289 = pneg %p104
        %p290 = pneg %p128
        %p291 = pneg %p125
        %p292 = pneg %p149
        %p293 = pneg %p146
        %p294 = pneg %p170
        %p295 = pneg %p167
        %p296 = pneg %p196
        %p297 = pneg %p193
        %s298 = sand.u32 %s183, 1
        %s299 = scalar_lea.sflag [#allocation4], %s298
        %s300 = sand.u32 %s183, 1
        %s301 = smul.addr %s300, 128
        %s302 = scalar_lea.vmem [#allocation7], %s301
        %s303 = smul.u32 16, %s23
        %p304 = scmp.lt.s32.totalorder %s303, 31
        %s305 = scalar_select %p304, %s303, 31
        %s306 = smul.addr %s305, 4
        %s307 = scalar_lea.vmem %s0, %s306
        %s308 = smul.u32 16, %s23
        %s309 = smul.u32 16, %s23
        %v311 = vld [vmem:[%s307] sm:$0xf]
        %v312 = vld [vmem:[%s307 + $0x4] sm:$0xf]
        %v313 = vld [vmem:[%s307 + $0x8] sm:$0xf]
        %v314 = vld [vmem:[%s307 + $0xc] sm:$0xf]
        %v315 = vld [vmem:[%s307 + $0x10] sm:$0xf]
        %v316 = vld [vmem:[%s307 + $0x14] sm:$0xf]
        %v317 = vld [vmem:[%s307 + $0x18] sm:$0xf]
        %v318 = vld [vmem:[%s307 + $0x1c] sm:$0xf]
        %v319 = vld [vmem:[%s307 + $0x20] sm:$0xf]
        %v320 = vld [vmem:[%s307 + $0x24] sm:$0xf]
        %v321 = vld [vmem:[%s307 + $0x28] sm:$0xf]
        %v322 = vld [vmem:[%s307 + $0x2c] sm:$0xf]
        %v323 = vld [vmem:[%s307 + $0x30] sm:$0xf]
        %v324 = vld [vmem:[%s307 + $0x34] sm:$0xf]
        %v325 = vld [vmem:[%s307 + $0x38] sm:$0xf]
        %v326 = vld [vmem:[%s307 + $0x3c] sm:$0xf]
        %v327 = vld [vmem:[#allocation2] sm:$0xff]
        %v328 = vld [vmem:[#allocation2 + $0x8] sm:$0xff]
        %v329 = vld [vmem:[#allocation2 + $0x10] sm:$0xff]
        %v330 = vld [vmem:[#allocation2 + $0x18] sm:$0xff]
        %v331 = vld [vmem:[#allocation2 + $0x20] sm:$0xff]
        %v332 = vld [vmem:[#allocation2 + $0x28] sm:$0xff]
        %v333 = vld [vmem:[#allocation2 + $0x30] sm:$0xff]
        %v334 = vld [vmem:[#allocation2 + $0x38] sm:$0xff]
        %v335 = vld [vmem:[%s2] sm:$0xf]
        %v337 = vlaneseq
        %v338 = vshrl.u32 %v337, 7
        %v339 = vsub.s32 0, %v338
        %v340 = vrot.slane %v335, %v339
        %v341 = vlaneseq
        %v342 = vshrl.u32 %v341, 7
        %v343 = vsub.s32 1, %v342
        %v344 = vrot.slane %v335, %v343
        %v345 = vlaneseq
        %v346 = vshrl.u32 %v345, 7
        %v347 = vsub.s32 2, %v346
        %v348 = vrot.slane %v335, %v347
        %v349 = vlaneseq
        %v350 = vshrl.u32 %v349, 7
        %v351 = vsub.s32 3, %v350
        %v352 = vrot.slane %v335, %v351
        %v373 = vunpack.c.l.b16 %v311
        %v374 = vunpack.c.l.b16 %v312
        %v375 = vunpack.c.l.b16 %v313
        %v376 = vunpack.c.l.b16 %v314
        %v377 = vunpack.c.l.b16 %v315
        %v378 = vunpack.c.l.b16 %v316
        %v379 = vunpack.c.l.b16 %v317
        %v380 = vunpack.c.l.b16 %v318
        %v381 = vunpack.c.l.b16 %v319
        %v382 = vunpack.c.l.b16 %v320
        %v383 = vunpack.c.l.b16 %v321
        %v384 = vunpack.c.l.b16 %v322
        %v385 = vunpack.c.l.b16 %v323
        %v386 = vunpack.c.l.b16 %v324
        %v387 = vunpack.c.l.b16 %v325
        %v388 = vunpack.c.l.b16 %v326
        %v389 = vpack.c.b16 %v374, %v373
        %v390 = vpack.c.b16 %v376, %v375
        %v391 = vpack.c.b16 %v378, %v377
        %v392 = vpack.c.b16 %v380, %v379
        %v393 = vpack.c.b16 %v382, %v381
        %v394 = vpack.c.b16 %v384, %v383
        %v395 = vpack.c.b16 %v386, %v385
        %v396 = vpack.c.b16 %v388, %v387
        %v405 = vunpack.c.l.b16 %v327
        %v406 = vunpack.c.h.b16 %v327
        %v407 = vunpack.c.l.b16 %v328
        %v408 = vunpack.c.h.b16 %v328
        %v409 = vunpack.c.l.b16 %v329
        %v410 = vunpack.c.h.b16 %v329
        %v411 = vunpack.c.l.b16 %v330
        %v412 = vunpack.c.h.b16 %v330
        %v413 = vunpack.c.l.b16 %v331
        %v414 = vunpack.c.h.b16 %v331
        %v415 = vunpack.c.l.b16 %v332
        %v416 = vunpack.c.h.b16 %v332
        %v417 = vunpack.c.l.b16 %v333
        %v418 = vunpack.c.h.b16 %v333
        %v419 = vunpack.c.l.b16 %v334
        %v420 = vunpack.c.h.b16 %v334
        %v421 = vpack.c.b16 %v409, %v405
        %v422 = vpack.c.b16 %v410, %v406
        %v423 = vpack.c.b16 %v411, %v407
        %v424 = vpack.c.b16 %v412, %v408
        %v425 = vpack.c.b16 %v417, %v413
        %v426 = vpack.c.b16 %v418, %v414
        %v427 = vpack.c.b16 %v419, %v415
        %v428 = vpack.c.b16 %v420, %v416
        %vm437 = vcmask 261120
        %v439 = vsel %vm437, %v389, 0
        %v442 = vsel %vm437, %v390, 0
        %v445 = vsel %vm437, %v391, 0
        %v448 = vsel %vm437, %v392, 0
        %v451 = vsel %vm437, %v393, 0
        %v454 = vsel %vm437, %v394, 0
        %v457 = vsel %vm437, %v395, 0
        %v460 = vsel %vm437, %v396, 0
        %462 = vmatprep.subr.bf16.mxu0 %v422
        %463 = vmatpush1.bf16.msra.mxu0 %v421
        %464 = vmatprep.subr.bf16.mxu0 %v426
        %465 = vmatpush1.bf16.msra.mxu0 %v425
        %466 = vmatprep.subr.bf16.mxu0 0
        %467 = vmatpush1.bf16.msra.mxu0 0
        %468 = vmatprep.subr.bf16.mxu0 0
        %469 = vmatpush1.bf16.msra.mxu0 0
        %470 = vmatprep.subr.bf16.mxu0 0
        %471 = vmatpush1.bf16.msra.mxu0 0
        %472 = vmatprep.subr.bf16.mxu0 0
        %473 = vmatpush1.bf16.msra.mxu0 0
        %474 = vmatprep.subr.bf16.mxu0 0
        %475 = vmatpush1.bf16.msra.mxu0 0
        %476 = vmatprep.subr.bf16.mxu0 0
        %477 = vmatpush1.bf16.msra.mxu0 0
        %478 = vmatprep.subr.bf16.mxu0 0
        %479 = vmatpush1.bf16.msra.mxu0 0
        %480 = vmatprep.subr.bf16.mxu0 0
        %481 = vmatpush1.bf16.msra.mxu0 0
        %482 = vmatprep.subr.bf16.mxu0 0
        %483 = vmatpush1.bf16.msra.mxu0 0
        %484 = vmatprep.subr.bf16.mxu0 0
        %485 = vmatpush1.bf16.msra.mxu0 0
        %486 = vmatprep.subr.bf16.mxu0 0
        %487 = vmatpush1.bf16.msra.mxu0 0
        %488 = vmatprep.subr.bf16.mxu0 0
        %489 = vmatpush1.bf16.msra.mxu0 0
        %490 = vmatprep.subr.bf16.mxu0 0
        %491 = vmatpush1.bf16.msra.mxu0 0
        %492 = vmatprep.subr.bf16.mxu0 0
        %493 = vmatpush1.bf16.msra.mxu0 0
        %494 = vmatprep.mubr.bf16.mxu0 0
        %495 = vmatmul.mubr.bf16.gmra.mrb[0].mxu0 %v439
        %v496 = vpop.f32.mrb[0].mxu0
        %v497 = vadd.f32 %v340, %v496
        %v498 = vpop.f32.mrb[0].mxu0
        %v499 = vadd.f32 %v344, %v498
        %v500 = vpop.f32.mrb[0].mxu0
        %v501 = vadd.f32 %v340, %v500
        %v502 = vpop.f32.mrb[0].mxu0
        %v503 = vadd.f32 %v344, %v502
        %504 = vmatprep.mubr.bf16.mxu0 0
        %505 = vmatmul.mubr.bf16.gmra.mrb[0].mxu0 %v442
        %v506 = vpop.f32.mrb[0].mxu0
        %v507 = vadd.f32 %v340, %v506
        %v508 = vpop.f32.mrb[0].mxu0
        %v509 = vadd.f32 %v344, %v508
        %v510 = vpop.f32.mrb[0].mxu0
        %v511 = vadd.f32 %v340, %v510
        %v512 = vpop.f32.mrb[0].mxu0
        %v513 = vadd.f32 %v344, %v512
        %514 = vmatprep.mubr.bf16.mxu0 0
        %515 = vmatmul.mubr.bf16.gmra.mrb[0].mxu0 %v445
        %v516 = vpop.f32.mrb[0].mxu0
        %v517 = vadd.f32 %v340, %v516
        %v518 = vpop.f32.mrb[0].mxu0
        %v519 = vadd.f32 %v344, %v518
        %v520 = vpop.f32.mrb[0].mxu0
        %v521 = vadd.f32 %v340, %v520
        %v522 = vpop.f32.mrb[0].mxu0
        %v523 = vadd.f32 %v344, %v522
        %524 = vmatprep.mubr.bf16.mxu0 0
        %525 = vmatmul.mubr.bf16.gmra.mrb[0].mxu0 %v448
        %v526 = vpop.f32.mrb[0].mxu0
        %v527 = vadd.f32 %v340, %v526
        %v528 = vpop.f32.mrb[0].mxu0
        %v529 = vadd.f32 %v344, %v528
        %v530 = vpop.f32.mrb[0].mxu0
        %v531 = vadd.f32 %v340, %v530
        %v532 = vpop.f32.mrb[0].mxu0
        %v533 = vadd.f32 %v344, %v532
        %534 = vmatprep.mubr.bf16.mxu0 0
        %535 = vmatmul.mubr.bf16.gmra.mrb[0].mxu0 %v451
        %v536 = vpop.f32.mrb[0].mxu0
        %v537 = vadd.f32 %v340, %v536
        %v538 = vpop.f32.mrb[0].mxu0
        %v539 = vadd.f32 %v344, %v538
        %v540 = vpop.f32.mrb[0].mxu0
        %v541 = vadd.f32 %v340, %v540
        %v542 = vpop.f32.mrb[0].mxu0
        %v543 = vadd.f32 %v344, %v542
        %544 = vmatprep.mubr.bf16.mxu0 0
        %545 = vmatmul.mubr.bf16.gmra.mrb[0].mxu0 %v454
        %v546 = vpop.f32.mrb[0].mxu0
        %v547 = vadd.f32 %v340, %v546
        %v548 = vpop.f32.mrb[0].mxu0
        %v549 = vadd.f32 %v344, %v548
        %v550 = vpop.f32.mrb[0].mxu0
        %v551 = vadd.f32 %v340, %v550
        %v552 = vpop.f32.mrb[0].mxu0
        %v553 = vadd.f32 %v344, %v552
        %554 = vmatprep.mubr.bf16.mxu0 0
        %555 = vmatmul.mubr.bf16.gmra.mrb[0].mxu0 %v457
        %v556 = vpop.f32.mrb[0].mxu0
        %v557 = vadd.f32 %v340, %v556
        %v558 = vpop.f32.mrb[0].mxu0
        %v559 = vadd.f32 %v344, %v558
        %v560 = vpop.f32.mrb[0].mxu0
        %v561 = vadd.f32 %v340, %v560
        %v562 = vpop.f32.mrb[0].mxu0
        %v563 = vadd.f32 %v344, %v562
        %564 = vmatprep.mubr.bf16.mxu0 0
        %565 = vmatmul.mubr.bf16.gmra.mrb[0].mxu0 %v460
        %v566 = vpop.f32.mrb[0].mxu0
        %v567 = vadd.f32 %v340, %v566
        %v568 = vpop.f32.mrb[0].mxu0
        %v569 = vadd.f32 %v344, %v568
        %v570 = vpop.f32.mrb[0].mxu0
        %v571 = vadd.f32 %v340, %v570
        %v572 = vpop.f32.mrb[0].mxu0
        %v573 = vadd.f32 %v344, %v572
        %574 = vdwg.mxu0
        %575 = vmatprep.subr.bf16.mxu0 %v424
        %576 = vmatpush1.bf16.msra.mxu0 %v423
        %577 = vmatprep.subr.bf16.mxu0 %v428
        %578 = vmatpush1.bf16.msra.mxu0 %v427
        %579 = vmatprep.subr.bf16.mxu0 0
        %580 = vmatpush1.bf16.msra.mxu0 0
        %581 = vmatprep.subr.bf16.mxu0 0
        %582 = vmatpush1.bf16.msra.mxu0 0
        %583 = vmatprep.subr.bf16.mxu0 0
        %584 = vmatpush1.bf16.msra.mxu0 0
        %585 = vmatprep.subr.bf16.mxu0 0
        %586 = vmatpush1.bf16.msra.mxu0 0
        %587 = vmatprep.subr.bf16.mxu0 0
        %588 = vmatpush1.bf16.msra.mxu0 0
        %589 = vmatprep.subr.bf16.mxu0 0
        %590 = vmatpush1.bf16.msra.mxu0 0
        %591 = vmatprep.subr.bf16.mxu0 0
        %592 = vmatpush1.bf16.msra.mxu0 0
        %593 = vmatprep.subr.bf16.mxu0 0
        %594 = vmatpush1.bf16.msra.mxu0 0
        %595 = vmatprep.subr.bf16.mxu0 0
        %596 = vmatpush1.bf16.msra.mxu0 0
        %597 = vmatprep.subr.bf16.mxu0 0
        %598 = vmatpush1.bf16.msra.mxu0 0
        %599 = vmatprep.subr.bf16.mxu0 0
        %600 = vmatpush1.bf16.msra.mxu0 0
        %601 = vmatprep.subr.bf16.mxu0 0
        %602 = vmatpush1.bf16.msra.mxu0 0
        %603 = vmatprep.subr.bf16.mxu0 0
        %604 = vmatpush1.bf16.msra.mxu0 0
        %605 = vmatprep.subr.bf16.mxu0 0
        %606 = vmatpush1.bf16.msra.mxu0 0
        %607 = vmatprep.mubr.bf16.mxu0 0
        %608 = vmatmul.mubr.bf16.gmra.mrb[0].mxu0 %v439
        %v609 = vpop.f32.mrb[0].mxu0
        %v610 = vadd.f32 %v348, %v609
        %v611 = vpop.f32.mrb[0].mxu0
        %v612 = vadd.f32 %v352, %v611
        %v613 = vpop.f32.mrb[0].mxu0
        %v614 = vadd.f32 %v348, %v613
        %v615 = vpop.f32.mrb[0].mxu0
        %v616 = vadd.f32 %v352, %v615
        %617 = vmatprep.mubr.bf16.mxu0 0
        %618 = vmatmul.mubr.bf16.gmra.mrb[0].mxu0 %v442
        %v619 = vpop.f32.mrb[0].mxu0
        %v620 = vadd.f32 %v348, %v619
        %v621 = vpop.f32.mrb[0].mxu0
        %v622 = vadd.f32 %v352, %v621
        %v623 = vpop.f32.mrb[0].mxu0
        %v624 = vadd.f32 %v348, %v623
        %v625 = vpop.f32.mrb[0].mxu0
        %v626 = vadd.f32 %v352, %v625
        %627 = vmatprep.mubr.bf16.mxu0 0
        %628 = vmatmul.mubr.bf16.gmra.mrb[0].mxu0 %v445
        %v629 = vpop.f32.mrb[0].mxu0
        %v630 = vadd.f32 %v348, %v629
        %v631 = vpop.f32.mrb[0].mxu0
        %v632 = vadd.f32 %v352, %v631
        %v633 = vpop.f32.mrb[0].mxu0
        %v634 = vadd.f32 %v348, %v633
        %v635 = vpop.f32.mrb[0].mxu0
        %v636 = vadd.f32 %v352, %v635
        %637 = vmatprep.mubr.bf16.mxu0 0
        %638 = vmatmul.mubr.bf16.gmra.mrb[0].mxu0 %v448
        %v639 = vpop.f32.mrb[0].mxu0
        %v640 = vadd.f32 %v348, %v639
        %v641 = vpop.f32.mrb[0].mxu0
        %v642 = vadd.f32 %v352, %v641
        %v643 = vpop.f32.mrb[0].mxu0
        %v644 = vadd.f32 %v348, %v643
        %v645 = vpop.f32.mrb[0].mxu0
        %v646 = vadd.f32 %v352, %v645
        %647 = vmatprep.mubr.bf16.mxu0 0
        %648 = vmatmul.mubr.bf16.gmra.mrb[0].mxu0 %v451
        %v649 = vpop.f32.mrb[0].mxu0
        %v650 = vadd.f32 %v348, %v649
        %v651 = vpop.f32.mrb[0].mxu0
        %v652 = vadd.f32 %v352, %v651
        %v653 = vpop.f32.mrb[0].mxu0
        %v654 = vadd.f32 %v348, %v653
        %v655 = vpop.f32.mrb[0].mxu0
        %v656 = vadd.f32 %v352, %v655
        %657 = vmatprep.mubr.bf16.mxu0 0
        %658 = vmatmul.mubr.bf16.gmra.mrb[0].mxu0 %v454
        %v659 = vpop.f32.mrb[0].mxu0
        %v660 = vadd.f32 %v348, %v659
        %v661 = vpop.f32.mrb[0].mxu0
        %v662 = vadd.f32 %v352, %v661
        %v663 = vpop.f32.mrb[0].mxu0
        %v664 = vadd.f32 %v348, %v663
        %v665 = vpop.f32.mrb[0].mxu0
        %v666 = vadd.f32 %v352, %v665
        %667 = vmatprep.mubr.bf16.mxu0 0
        %668 = vmatmul.mubr.bf16.gmra.mrb[0].mxu0 %v457
        %v669 = vpop.f32.mrb[0].mxu0
        %v670 = vadd.f32 %v348, %v669
        %v671 = vpop.f32.mrb[0].mxu0
        %v672 = vadd.f32 %v352, %v671
        %v673 = vpop.f32.mrb[0].mxu0
        %v674 = vadd.f32 %v348, %v673
        %v675 = vpop.f32.mrb[0].mxu0
        %v676 = vadd.f32 %v352, %v675
        %677 = vmatprep.mubr.bf16.mxu0 0
        %678 = vmatmul.mubr.bf16.gmra.mrb[0].mxu0 %v460
        %v679 = vpop.f32.mrb[0].mxu0
        %v680 = vadd.f32 %v348, %v679
        %v681 = vpop.f32.mrb[0].mxu0
        %v682 = vadd.f32 %v352, %v681
        %v683 = vpop.f32.mrb[0].mxu0
        %v684 = vadd.f32 %v348, %v683
        %v685 = vpop.f32.mrb[0].mxu0
        %v686 = vadd.f32 %v352, %v685
        %687 = vdwg.mxu0
        %v688 = vmax.f32 %v497, 0.0
        %v689 = vmax.f32 %v499, 0.0
        %v690 = vmax.f32 %v610, 0.0
        %v691 = vmax.f32 %v612, 0.0
        %v692 = vmax.f32 %v501, 0.0
        %v693 = vmax.f32 %v503, 0.0
        %v694 = vmax.f32 %v614, 0.0
        %v695 = vmax.f32 %v616, 0.0
        %v696 = vmax.f32 %v507, 0.0
        %v697 = vmax.f32 %v509, 0.0
        %v698 = vmax.f32 %v620, 0.0
        %v699 = vmax.f32 %v622, 0.0
        %v700 = vmax.f32 %v511, 0.0
        %v701 = vmax.f32 %v513, 0.0
        %v702 = vmax.f32 %v624, 0.0
        %v703 = vmax.f32 %v626, 0.0
        %v704 = vmax.f32 %v517, 0.0
        %v705 = vmax.f32 %v519, 0.0
        %v706 = vmax.f32 %v630, 0.0
        %v707 = vmax.f32 %v632, 0.0
        %v708 = vmax.f32 %v521, 0.0
        %v709 = vmax.f32 %v523, 0.0
        %v710 = vmax.f32 %v634, 0.0
        %v711 = vmax.f32 %v636, 0.0
        %v712 = vmax.f32 %v527, 0.0
        %v713 = vmax.f32 %v529, 0.0
        %v714 = vmax.f32 %v640, 0.0
        %v715 = vmax.f32 %v642, 0.0
        %v716 = vmax.f32 %v531, 0.0
        %v717 = vmax.f32 %v533, 0.0
        %v718 = vmax.f32 %v644, 0.0
        %v719 = vmax.f32 %v646, 0.0
        %v720 = vmax.f32 %v537, 0.0
        %v721 = vmax.f32 %v539, 0.0
        %v722 = vmax.f32 %v650, 0.0
        %v723 = vmax.f32 %v652, 0.0
        %v724 = vmax.f32 %v541, 0.0
        %v725 = vmax.f32 %v543, 0.0
        %v726 = vmax.f32 %v654, 0.0
        %v727 = vmax.f32 %v656, 0.0
        %v728 = vmax.f32 %v547, 0.0
        %v729 = vmax.f32 %v549, 0.0
        %v730 = vmax.f32 %v660, 0.0
        %v731 = vmax.f32 %v662, 0.0
        %v732 = vmax.f32 %v551, 0.0
        %v733 = vmax.f32 %v553, 0.0
        %v734 = vmax.f32 %v664, 0.0
        %v735 = vmax.f32 %v666, 0.0
        %v736 = vmax.f32 %v557, 0.0
        %v737 = vmax.f32 %v559, 0.0
        %v738 = vmax.f32 %v670, 0.0
        %v739 = vmax.f32 %v672, 0.0
        %v740 = vmax.f32 %v561, 0.0
        %v741 = vmax.f32 %v563, 0.0
        %v742 = vmax.f32 %v674, 0.0
        %v743 = vmax.f32 %v676, 0.0
        %v744 = vmax.f32 %v567, 0.0
        %v745 = vmax.f32 %v569, 0.0
        %v746 = vmax.f32 %v680, 0.0
        %v747 = vmax.f32 %v682, 0.0
        %v748 = vmax.f32 %v571, 0.0
        %v749 = vmax.f32 %v573, 0.0
        %v750 = vmax.f32 %v684, 0.0
        %v751 = vmax.f32 %v686, 0.0
        %v752 = vpack.c.bf16 %v692, %v688
        %v753 = vpack.c.bf16 %v693, %v689
        %v754 = vpack.c.bf16 %v694, %v690
        %v755 = vpack.c.bf16 %v695, %v691
        %v756 = vpack.c.bf16 %v700, %v696
        %v757 = vpack.c.bf16 %v701, %v697
        %v758 = vpack.c.bf16 %v702, %v698
        %v759 = vpack.c.bf16 %v703, %v699
        %v760 = vpack.c.bf16 %v708, %v704
        %v761 = vpack.c.bf16 %v709, %v705
        %v762 = vpack.c.bf16 %v710, %v706
        %v763 = vpack.c.bf16 %v711, %v707
        %v764 = vpack.c.bf16 %v716, %v712
        %v765 = vpack.c.bf16 %v717, %v713
        %v766 = vpack.c.bf16 %v718, %v714
        %v767 = vpack.c.bf16 %v719, %v715
        %v768 = vpack.c.bf16 %v724, %v720
        %v769 = vpack.c.bf16 %v725, %v721
        %v770 = vpack.c.bf16 %v726, %v722
        %v771 = vpack.c.bf16 %v727, %v723
        %v772 = vpack.c.bf16 %v732, %v728
        %v773 = vpack.c.bf16 %v733, %v729
        %v774 = vpack.c.bf16 %v734, %v730
        %v775 = vpack.c.bf16 %v735, %v731
        %v776 = vpack.c.bf16 %v740, %v736
        %v777 = vpack.c.bf16 %v741, %v737
        %v778 = vpack.c.bf16 %v742, %v738
        %v779 = vpack.c.bf16 %v743, %v739
        %v780 = vpack.c.bf16 %v748, %v744
        %v781 = vpack.c.bf16 %v749, %v745
        %v782 = vpack.c.bf16 %v750, %v746
        %v783 = vpack.c.bf16 %v751, %v747
        %v784 = vld [vmem:[#allocation5] sm:$0xff]
        %v785 = vld [vmem:[#allocation5 + $0x8] sm:$0xff]
        %v786 = vld [vmem:[#allocation5 + $0x10] sm:$0xff]
        %v787 = vld [vmem:[#allocation5 + $0x18] sm:$0xff]
        %v788 = vld [vmem:[#allocation5 + $0x20] sm:$0xff]
        %v789 = vld [vmem:[#allocation5 + $0x28] sm:$0xff]
        %v790 = vld [vmem:[#allocation5 + $0x30] sm:$0xff]
        %v791 = vld [vmem:[#allocation5 + $0x38] sm:$0xff]
        %v792 = vld [vmem:[#allocation5 + $0x40] sm:$0xff]
        %v793 = vld [vmem:[#allocation5 + $0x48] sm:$0xff]
        %v794 = vld [vmem:[#allocation5 + $0x50] sm:$0xff]
        %v795 = vld [vmem:[#allocation5 + $0x58] sm:$0xff]
        %v796 = vld [vmem:[#allocation5 + $0x60] sm:$0xff]
        %v797 = vld [vmem:[#allocation5 + $0x68] sm:$0xff]
        %v798 = vld [vmem:[#allocation5 + $0x70] sm:$0xff]
        %v799 = vld [vmem:[#allocation5 + $0x78] sm:$0xff]
        %v800 = vld [vmem:[#allocation5 + $0x80] sm:$0xff]
        %v801 = vld [vmem:[#allocation5 + $0x88] sm:$0xff]
        %v802 = vld [vmem:[#allocation5 + $0x90] sm:$0xff]
        %v803 = vld [vmem:[#allocation5 + $0x98] sm:$0xff]
        %v804 = vld [vmem:[#allocation5 + $0xa0] sm:$0xff]
        %v805 = vld [vmem:[#allocation5 + $0xa8] sm:$0xff]
        %v806 = vld [vmem:[#allocation5 + $0xb0] sm:$0xff]
        %v807 = vld [vmem:[#allocation5 + $0xb8] sm:$0xff]
        %v808 = vld [vmem:[#allocation5 + $0xc0] sm:$0xff]
        %v809 = vld [vmem:[#allocation5 + $0xc8] sm:$0xff]
        %v810 = vld [vmem:[#allocation5 + $0xd0] sm:$0xff]
        %v811 = vld [vmem:[#allocation5 + $0xd8] sm:$0xff]
        %v812 = vld [vmem:[#allocation5 + $0xe0] sm:$0xff]
        %v813 = vld [vmem:[#allocation5 + $0xe8] sm:$0xff]
        %v814 = vld [vmem:[#allocation5 + $0xf0] sm:$0xff]
        %v815 = vld [vmem:[#allocation5 + $0xf8] sm:$0xff]
        %v816 = vld [vmem:[#allocation5 + $0x100] sm:$0xff]
        %v817 = vld [vmem:[#allocation5 + $0x108] sm:$0xff]
        %v818 = vld [vmem:[#allocation5 + $0x110] sm:$0xff]
        %v819 = vld [vmem:[#allocation5 + $0x118] sm:$0xff]
        %v820 = vld [vmem:[#allocation5 + $0x120] sm:$0xff]
        %v821 = vld [vmem:[#allocation5 + $0x128] sm:$0xff]
        %v822 = vld [vmem:[#allocation5 + $0x130] sm:$0xff]
        %v823 = vld [vmem:[#allocation5 + $0x138] sm:$0xff]
        %v824 = vld [vmem:[#allocation5 + $0x140] sm:$0xff]
        %v825 = vld [vmem:[#allocation5 + $0x148] sm:$0xff]
        %v826 = vld [vmem:[#allocation5 + $0x150] sm:$0xff]
        %v827 = vld [vmem:[#allocation5 + $0x158] sm:$0xff]
        %v828 = vld [vmem:[#allocation5 + $0x160] sm:$0xff]
        %v829 = vld [vmem:[#allocation5 + $0x168] sm:$0xff]
        %v830 = vld [vmem:[#allocation5 + $0x170] sm:$0xff]
        %v831 = vld [vmem:[#allocation5 + $0x178] sm:$0xff]
        %v832 = vld [vmem:[#allocation5 + $0x180] sm:$0xff]
        %v833 = vld [vmem:[#allocation5 + $0x188] sm:$0xff]
        %v834 = vld [vmem:[#allocation5 + $0x190] sm:$0xff]
        %v835 = vld [vmem:[#allocation5 + $0x198] sm:$0xff]
        %v836 = vld [vmem:[#allocation5 + $0x1a0] sm:$0xff]
        %v837 = vld [vmem:[#allocation5 + $0x1a8] sm:$0xff]
        %v838 = vld [vmem:[#allocation5 + $0x1b0] sm:$0xff]
        %v839 = vld [vmem:[#allocation5 + $0x1b8] sm:$0xff]
        %v840 = vld [vmem:[#allocation5 + $0x1c0] sm:$0xff]
        %v841 = vld [vmem:[#allocation5 + $0x1c8] sm:$0xff]
        %v842 = vld [vmem:[#allocation5 + $0x1d0] sm:$0xff]
        %v843 = vld [vmem:[#allocation5 + $0x1d8] sm:$0xff]
        %v844 = vld [vmem:[#allocation5 + $0x1e0] sm:$0xff]
        %v845 = vld [vmem:[#allocation5 + $0x1e8] sm:$0xff]
        %v846 = vld [vmem:[#allocation5 + $0x1f0] sm:$0xff]
        %v847 = vld [vmem:[#allocation5 + $0x1f8] sm:$0xff]
        %v848 = vld [vmem:[%s4] sm:$0x3]
        %v850 = vlaneseq
        %v851 = vshrl.u32 %v850, 7
        %v852 = vsub.s32 0, %v851
        %v853 = vrot.slane %v848, %v852
        %v854 = vlaneseq
        %v855 = vshrl.u32 %v854, 7
        %v856 = vsub.s32 1, %v855
        %v857 = vrot.slane %v848, %v856
        %v924 = vunpack.c.l.b16 %v784
        %v925 = vunpack.c.h.b16 %v784
        %v926 = vunpack.c.l.b16 %v785
        %v927 = vunpack.c.h.b16 %v785
        %v928 = vunpack.c.l.b16 %v786
        %v929 = vunpack.c.h.b16 %v786
        %v930 = vunpack.c.l.b16 %v787
        %v931 = vunpack.c.h.b16 %v787
        %v932 = vunpack.c.l.b16 %v788
        %v933 = vunpack.c.h.b16 %v788
        %v934 = vunpack.c.l.b16 %v789
        %v935 = vunpack.c.h.b16 %v789
        %v936 = vunpack.c.l.b16 %v790
        %v937 = vunpack.c.h.b16 %v790
        %v938 = vunpack.c.l.b16 %v791
        %v939 = vunpack.c.h.b16 %v791
        %v940 = vunpack.c.l.b16 %v792
        %v941 = vunpack.c.h.b16 %v792
        %v942 = vunpack.c.l.b16 %v793
        %v943 = vunpack.c.h.b16 %v793
        %v944 = vunpack.c.l.b16 %v794
        %v945 = vunpack.c.h.b16 %v794
        %v946 = vunpack.c.l.b16 %v795
        %v947 = vunpack.c.h.b16 %v795
        %v948 = vunpack.c.l.b16 %v796
        %v949 = vunpack.c.h.b16 %v796
        %v950 = vunpack.c.l.b16 %v797
        %v951 = vunpack.c.h.b16 %v797
        %v952 = vunpack.c.l.b16 %v798
        %v953 = vunpack.c.h.b16 %v798
        %v954 = vunpack.c.l.b16 %v799
        %v955 = vunpack.c.h.b16 %v799
        %v956 = vunpack.c.l.b16 %v800
        %v957 = vunpack.c.h.b16 %v800
        %v958 = vunpack.c.l.b16 %v801
        %v959 = vunpack.c.h.b16 %v801
        %v960 = vunpack.c.l.b16 %v802
        %v961 = vunpack.c.h.b16 %v802
        %v962 = vunpack.c.l.b16 %v803
        %v963 = vunpack.c.h.b16 %v803
        %v964 = vunpack.c.l.b16 %v804
        %v965 = vunpack.c.h.b16 %v804
        %v966 = vunpack.c.l.b16 %v805
        %v967 = vunpack.c.h.b16 %v805
        %v968 = vunpack.c.l.b16 %v806
        %v969 = vunpack.c.h.b16 %v806
        %v970 = vunpack.c.l.b16 %v807
        %v971 = vunpack.c.h.b16 %v807
        %v972 = vunpack.c.l.b16 %v808
        %v973 = vunpack.c.h.b16 %v808
        %v974 = vunpack.c.l.b16 %v809
        %v975 = vunpack.c.h.b16 %v809
        %v976 = vunpack.c.l.b16 %v810
        %v977 = vunpack.c.h.b16 %v810
        %v978 = vunpack.c.l.b16 %v811
        %v979 = vunpack.c.h.b16 %v811
        %v980 = vunpack.c.l.b16 %v812
        %v981 = vunpack.c.h.b16 %v812
        %v982 = vunpack.c.l.b16 %v813
        %v983 = vunpack.c.h.b16 %v813
        %v984 = vunpack.c.l.b16 %v814
        %v985 = vunpack.c.h.b16 %v814
        %v986 = vunpack.c.l.b16 %v815
        %v987 = vunpack.c.h.b16 %v815
        %v988 = vunpack.c.l.b16 %v816
        %v989 = vunpack.c.h.b16 %v816
        %v990 = vunpack.c.l.b16 %v817
        %v991 = vunpack.c.h.b16 %v817
        %v992 = vunpack.c.l.b16 %v818
        %v993 = vunpack.c.h.b16 %v818
        %v994 = vunpack.c.l.b16 %v819
        %v995 = vunpack.c.h.b16 %v819
        %v996 = vunpack.c.l.b16 %v820
        %v997 = vunpack.c.h.b16 %v820
        %v998 = vunpack.c.l.b16 %v821
        %v999 = vunpack.c.h.b16 %v821
        %v1000 = vunpack.c.l.b16 %v822
        %v1001 = vunpack.c.h.b16 %v822
        %v1002 = vunpack.c.l.b16 %v823
        %v1003 = vunpack.c.h.b16 %v823
        %v1004 = vunpack.c.l.b16 %v824
        %v1005 = vunpack.c.h.b16 %v824
        %v1006 = vunpack.c.l.b16 %v825
        %v1007 = vunpack.c.h.b16 %v825
        %v1008 = vunpack.c.l.b16 %v826
        %v1009 = vunpack.c.h.b16 %v826
        %v1010 = vunpack.c.l.b16 %v827
        %v1011 = vunpack.c.h.b16 %v827
        %v1012 = vunpack.c.l.b16 %v828
        %v1013 = vunpack.c.h.b16 %v828
        %v1014 = vunpack.c.l.b16 %v829
        %v1015 = vunpack.c.h.b16 %v829
        %v1016 = vunpack.c.l.b16 %v830
        %v1017 = vunpack.c.h.b16 %v830
        %v1018 = vunpack.c.l.b16 %v831
        %v1019 = vunpack.c.h.b16 %v831
        %v1020 = vunpack.c.l.b16 %v832
        %v1021 = vunpack.c.h.b16 %v832
        %v1022 = vunpack.c.l.b16 %v833
        %v1023 = vunpack.c.h.b16 %v833
        %v1024 = vunpack.c.l.b16 %v834
        %v1025 = vunpack.c.h.b16 %v834
        %v1026 = vunpack.c.l.b16 %v835
        %v1027 = vunpack.c.h.b16 %v835
        %v1028 = vunpack.c.l.b16 %v836
        %v1029 = vunpack.c.h.b16 %v836
        %v1030 = vunpack.c.l.b16 %v837
        %v1031 = vunpack.c.h.b16 %v837
        %v1032 = vunpack.c.l.b16 %v838
        %v1033 = vunpack.c.h.b16 %v838
        %v1034 = vunpack.c.l.b16 %v839
        %v1035 = vunpack.c.h.b16 %v839
        %v1036 = vunpack.c.l.b16 %v840
        %v1037 = vunpack.c.h.b16 %v840
        %v1038 = vunpack.c.l.b16 %v841
        %v1039 = vunpack.c.h.b16 %v841
        %v1040 = vunpack.c.l.b16 %v842
        %v1041 = vunpack.c.h.b16 %v842
        %v1042 = vunpack.c.l.b16 %v843
        %v1043 = vunpack.c.h.b16 %v843
        %v1044 = vunpack.c.l.b16 %v844
        %v1045 = vunpack.c.h.b16 %v844
        %v1046 = vunpack.c.l.b16 %v845
        %v1047 = vunpack.c.h.b16 %v845
        %v1048 = vunpack.c.l.b16 %v846
        %v1049 = vunpack.c.h.b16 %v846
        %v1050 = vunpack.c.l.b16 %v847
        %v1051 = vunpack.c.h.b16 %v847
        %v1052 = vpack.c.b16 %v926, %v924
        %v1053 = vpack.c.b16 %v927, %v925
        %v1054 = vpack.c.b16 %v930, %v928
        %v1055 = vpack.c.b16 %v931, %v929
        %v1056 = vpack.c.b16 %v934, %v932
        %v1057 = vpack.c.b16 %v935, %v933
        %v1058 = vpack.c.b16 %v938, %v936
        %v1059 = vpack.c.b16 %v939, %v937
        %v1060 = vpack.c.b16 %v942, %v940
        %v1061 = vpack.c.b16 %v943, %v941
        %v1062 = vpack.c.b16 %v946, %v944
        %v1063 = vpack.c.b16 %v947, %v945
        %v1064 = vpack.c.b16 %v950, %v948
        %v1065 = vpack.c.b16 %v951, %v949
        %v1066 = vpack.c.b16 %v954, %v952
        %v1067 = vpack.c.b16 %v955, %v953
        %v1068 = vpack.c.b16 %v958, %v956
        %v1069 = vpack.c.b16 %v959, %v957
        %v1070 = vpack.c.b16 %v962, %v960
        %v1071 = vpack.c.b16 %v963, %v961
        %v1072 = vpack.c.b16 %v966, %v964
        %v1073 = vpack.c.b16 %v967, %v965
        %v1074 = vpack.c.b16 %v970, %v968
        %v1075 = vpack.c.b16 %v971, %v969
        %v1076 = vpack.c.b16 %v974, %v972
        %v1077 = vpack.c.b16 %v975, %v973
        %v1078 = vpack.c.b16 %v978, %v976
        %v1079 = vpack.c.b16 %v979, %v977
        %v1080 = vpack.c.b16 %v982, %v980
        %v1081 = vpack.c.b16 %v983, %v981
        %v1082 = vpack.c.b16 %v986, %v984
        %v1083 = vpack.c.b16 %v987, %v985
        %v1084 = vpack.c.b16 %v990, %v988
        %v1085 = vpack.c.b16 %v991, %v989
        %v1086 = vpack.c.b16 %v994, %v992
        %v1087 = vpack.c.b16 %v995, %v993
        %v1088 = vpack.c.b16 %v998, %v996
        %v1089 = vpack.c.b16 %v999, %v997
        %v1090 = vpack.c.b16 %v1002, %v1000
        %v1091 = vpack.c.b16 %v1003, %v1001
        %v1092 = vpack.c.b16 %v1006, %v1004
        %v1093 = vpack.c.b16 %v1007, %v1005
        %v1094 = vpack.c.b16 %v1010, %v1008
        %v1095 = vpack.c.b16 %v1011, %v1009
        %v1096 = vpack.c.b16 %v1014, %v1012
        %v1097 = vpack.c.b16 %v1015, %v1013
        %v1098 = vpack.c.b16 %v1018, %v1016
        %v1099 = vpack.c.b16 %v1019, %v1017
        %v1100 = vpack.c.b16 %v1022, %v1020
        %v1101 = vpack.c.b16 %v1023, %v1021
        %v1102 = vpack.c.b16 %v1026, %v1024
        %v1103 = vpack.c.b16 %v1027, %v1025
        %v1104 = vpack.c.b16 %v1030, %v1028
        %v1105 = vpack.c.b16 %v1031, %v1029
        %v1106 = vpack.c.b16 %v1034, %v1032
        %v1107 = vpack.c.b16 %v1035, %v1033
        %v1108 = vpack.c.b16 %v1038, %v1036
        %v1109 = vpack.c.b16 %v1039, %v1037
        %v1110 = vpack.c.b16 %v1042, %v1040
        %v1111 = vpack.c.b16 %v1043, %v1041
        %v1112 = vpack.c.b16 %v1046, %v1044
        %v1113 = vpack.c.b16 %v1047, %v1045
        %v1114 = vpack.c.b16 %v1050, %v1048
        %v1115 = vpack.c.b16 %v1051, %v1049
        %1180 = vmatprep.subr.bf16.mxu0 %v1053
        %1181 = vmatpush1.bf16.msra.mxu0 %v1052
        %1182 = vmatprep.subr.bf16.mxu0 %v1055
        %1183 = vmatpush1.bf16.msra.mxu0 %v1054
        %1184 = vmatprep.subr.bf16.mxu0 %v1057
        %1185 = vmatpush1.bf16.msra.mxu0 %v1056
        %1186 = vmatprep.subr.bf16.mxu0 %v1059
        %1187 = vmatpush1.bf16.msra.mxu0 %v1058
        %1188 = vmatprep.subr.bf16.mxu0 %v1061
        %1189 = vmatpush1.bf16.msra.mxu0 %v1060
        %1190 = vmatprep.subr.bf16.mxu0 %v1063
        %1191 = vmatpush1.bf16.msra.mxu0 %v1062
        %1192 = vmatprep.subr.bf16.mxu0 %v1065
        %1193 = vmatpush1.bf16.msra.mxu0 %v1064
        %1194 = vmatprep.subr.bf16.mxu0 %v1067
        %1195 = vmatpush1.bf16.msra.mxu0 %v1066
        %1196 = vmatprep.subr.bf16.mxu0 %v1069
        %1197 = vmatpush1.bf16.msra.mxu0 %v1068
        %1198 = vmatprep.subr.bf16.mxu0 %v1071
        %1199 = vmatpush1.bf16.msra.mxu0 %v1070
        %1200 = vmatprep.subr.bf16.mxu0 %v1073
        %1201 = vmatpush1.bf16.msra.mxu0 %v1072
        %1202 = vmatprep.subr.bf16.mxu0 %v1075
        %1203 = vmatpush1.bf16.msra.mxu0 %v1074
        %1204 = vmatprep.subr.bf16.mxu0 %v1077
        %1205 = vmatpush1.bf16.msra.mxu0 %v1076
        %1206 = vmatprep.subr.bf16.mxu0 %v1079
        %1207 = vmatpush1.bf16.msra.mxu0 %v1078
        %1208 = vmatprep.subr.bf16.mxu0 %v1081
        %1209 = vmatpush1.bf16.msra.mxu0 %v1080
        %1210 = vmatprep.subr.bf16.mxu0 %v1083
        %1211 = vmatpush1.bf16.msra.mxu0 %v1082
        %1212 = vmatprep.mubr.bf16.mxu0 %v753
        %1213 = vmatmul.mubr.bf16.gmra.mrb[0].mxu0 %v752
        %v1214 = vpop.f32.mrb[0].mxu0
        %v1215 = vadd.f32 %v853, %v1214
        %v1216 = vpop.f32.mrb[0].mxu0
        %v1217 = vadd.f32 %v857, %v1216
        %v1218 = vpop.f32.mrb[0].mxu0
        %v1219 = vadd.f32 %v853, %v1218
        %v1220 = vpop.f32.mrb[0].mxu0
        %v1221 = vadd.f32 %v857, %v1220
        %1222 = vmatprep.mubr.bf16.mxu0 %v757
        %1223 = vmatmul.mubr.bf16.gmra.mrb[0].mxu0 %v756
        %v1224 = vpop.f32.mrb[0].mxu0
        %v1225 = vadd.f32 %v853, %v1224
        %v1226 = vpop.f32.mrb[0].mxu0
        %v1227 = vadd.f32 %v857, %v1226
        %v1228 = vpop.f32.mrb[0].mxu0
        %v1229 = vadd.f32 %v853, %v1228
        %v1230 = vpop.f32.mrb[0].mxu0
        %v1231 = vadd.f32 %v857, %v1230
        %1232 = vmatprep.mubr.bf16.mxu0 %v761
        %1233 = vmatmul.mubr.bf16.gmra.mrb[0].mxu0 %v760
        %v1234 = vpop.f32.mrb[0].mxu0
        %v1235 = vadd.f32 %v853, %v1234
        %v1236 = vpop.f32.mrb[0].mxu0
        %v1237 = vadd.f32 %v857, %v1236
        %v1238 = vpop.f32.mrb[0].mxu0
        %v1239 = vadd.f32 %v853, %v1238
        %v1240 = vpop.f32.mrb[0].mxu0
        %v1241 = vadd.f32 %v857, %v1240
        %1242 = vmatprep.mubr.bf16.mxu0 %v765
        %1243 = vmatmul.mubr.bf16.gmra.mrb[0].mxu0 %v764
        %v1244 = vpop.f32.mrb[0].mxu0
        %v1245 = vadd.f32 %v853, %v1244
        %v1246 = vpop.f32.mrb[0].mxu0
        %v1247 = vadd.f32 %v857, %v1246
        %v1248 = vpop.f32.mrb[0].mxu0
        %v1249 = vadd.f32 %v853, %v1248
        %v1250 = vpop.f32.mrb[0].mxu0
        %v1251 = vadd.f32 %v857, %v1250
        %1252 = vmatprep.mubr.bf16.mxu0 %v769
        %1253 = vmatmul.mubr.bf16.gmra.mrb[0].mxu0 %v768
        %v1254 = vpop.f32.mrb[0].mxu0
        %v1255 = vadd.f32 %v853, %v1254
        %v1256 = vpop.f32.mrb[0].mxu0
        %v1257 = vadd.f32 %v857, %v1256
        %v1258 = vpop.f32.mrb[0].mxu0
        %v1259 = vadd.f32 %v853, %v1258
        %v1260 = vpop.f32.mrb[0].mxu0
        %v1261 = vadd.f32 %v857, %v1260
        %1262 = vmatprep.mubr.bf16.mxu0 %v773
        %1263 = vmatmul.mubr.bf16.gmra.mrb[0].mxu0 %v772
        %v1264 = vpop.f32.mrb[0].mxu0
        %v1265 = vadd.f32 %v853, %v1264
        %v1266 = vpop.f32.mrb[0].mxu0
        %v1267 = vadd.f32 %v857, %v1266
        %v1268 = vpop.f32.mrb[0].mxu0
        %v1269 = vadd.f32 %v853, %v1268
        %v1270 = vpop.f32.mrb[0].mxu0
        %v1271 = vadd.f32 %v857, %v1270
        %1272 = vmatprep.mubr.bf16.mxu0 %v777
        %1273 = vmatmul.mubr.bf16.gmra.mrb[0].mxu0 %v776
        %v1274 = vpop.f32.mrb[0].mxu0
        %v1275 = vadd.f32 %v853, %v1274
        %v1276 = vpop.f32.mrb[0].mxu0
        %v1277 = vadd.f32 %v857, %v1276
        %v1278 = vpop.f32.mrb[0].mxu0
        %v1279 = vadd.f32 %v853, %v1278
        %v1280 = vpop.f32.mrb[0].mxu0
        %v1281 = vadd.f32 %v857, %v1280
        %1282 = vmatprep.mubr.bf16.mxu0 %v781
        %1283 = vmatmul.mubr.bf16.gmra.mrb[0].mxu0 %v780
        %v1284 = vpop.f32.mrb[0].mxu0
        %v1285 = vadd.f32 %v853, %v1284
        %v1286 = vpop.f32.mrb[0].mxu0
        %v1287 = vadd.f32 %v857, %v1286
        %v1288 = vpop.f32.mrb[0].mxu0
        %v1289 = vadd.f32 %v853, %v1288
        %v1290 = vpop.f32.mrb[0].mxu0
        %v1291 = vadd.f32 %v857, %v1290
        %1292 = vdwg.mxu0
        %1293 = vmatprep.subr.bf16.mxu0 %v1085
        %1294 = vmatpush1.bf16.msra.mxu0 %v1084
        %1295 = vmatprep.subr.bf16.mxu0 %v1087
        %1296 = vmatpush1.bf16.msra.mxu0 %v1086
        %1297 = vmatprep.subr.bf16.mxu0 %v1089
        %1298 = vmatpush1.bf16.msra.mxu0 %v1088
        %1299 = vmatprep.subr.bf16.mxu0 %v1091
        %1300 = vmatpush1.bf16.msra.mxu0 %v1090
        %1301 = vmatprep.subr.bf16.mxu0 %v1093
        %1302 = vmatpush1.bf16.msra.mxu0 %v1092
        %1303 = vmatprep.subr.bf16.mxu0 %v1095
        %1304 = vmatpush1.bf16.msra.mxu0 %v1094
        %1305 = vmatprep.subr.bf16.mxu0 %v1097
        %1306 = vmatpush1.bf16.msra.mxu0 %v1096
        %1307 = vmatprep.subr.bf16.mxu0 %v1099
        %1308 = vmatpush1.bf16.msra.mxu0 %v1098
        %1309 = vmatprep.subr.bf16.mxu0 %v1101
        %1310 = vmatpush1.bf16.msra.mxu0 %v1100
        %1311 = vmatprep.subr.bf16.mxu0 %v1103
        %1312 = vmatpush1.bf16.msra.mxu0 %v1102
        %1313 = vmatprep.subr.bf16.mxu0 %v1105
        %1314 = vmatpush1.bf16.msra.mxu0 %v1104
        %1315 = vmatprep.subr.bf16.mxu0 %v1107
        %1316 = vmatpush1.bf16.msra.mxu0 %v1106
        %1317 = vmatprep.subr.bf16.mxu0 %v1109
        %1318 = vmatpush1.bf16.msra.mxu0 %v1108
        %1319 = vmatprep.subr.bf16.mxu0 %v1111
        %1320 = vmatpush1.bf16.msra.mxu0 %v1110
        %1321 = vmatprep.subr.bf16.mxu0 %v1113
        %1322 = vmatpush1.bf16.msra.mxu0 %v1112
        %1323 = vmatprep.subr.bf16.mxu0 %v1115
        %1324 = vmatpush1.bf16.msra.mxu0 %v1114
        %1325 = vmatprep.mubr.bf16.mxu0 %v755
        %1326 = vmatmul.mubr.bf16.gmra.mrb[0].mxu0 %v754
        %v1327 = vpop.f32.mrb[0].mxu0
        %v1328 = vadd.f32 %v1215, %v1327
        %v1329 = vpop.f32.mrb[0].mxu0
        %v1330 = vadd.f32 %v1217, %v1329
        %v1331 = vpop.f32.mrb[0].mxu0
        %v1332 = vadd.f32 %v1219, %v1331
        %v1333 = vpop.f32.mrb[0].mxu0
        %v1334 = vadd.f32 %v1221, %v1333
        %1335 = vmatprep.mubr.bf16.mxu0 %v759
        %1336 = vmatmul.mubr.bf16.gmra.mrb[0].mxu0 %v758
        %v1337 = vpop.f32.mrb[0].mxu0
        %v1338 = vadd.f32 %v1225, %v1337
        %v1339 = vpop.f32.mrb[0].mxu0
        %v1340 = vadd.f32 %v1227, %v1339
        %v1341 = vpop.f32.mrb[0].mxu0
        %v1342 = vadd.f32 %v1229, %v1341
        %v1343 = vpop.f32.mrb[0].mxu0
        %v1344 = vadd.f32 %v1231, %v1343
        %1345 = vmatprep.mubr.bf16.mxu0 %v763
        %1346 = vmatmul.mubr.bf16.gmra.mrb[0].mxu0 %v762
        %v1347 = vpop.f32.mrb[0].mxu0
        %v1348 = vadd.f32 %v1235, %v1347
        %v1349 = vpop.f32.mrb[0].mxu0
        %v1350 = vadd.f32 %v1237, %v1349
        %v1351 = vpop.f32.mrb[0].mxu0
        %v1352 = vadd.f32 %v1239, %v1351
        %v1353 = vpop.f32.mrb[0].mxu0
        %v1354 = vadd.f32 %v1241, %v1353
        %1355 = vmatprep.mubr.bf16.mxu0 %v767
        %1356 = vmatmul.mubr.bf16.gmra.mrb[0].mxu0 %v766
        %v1357 = vpop.f32.mrb[0].mxu0
        %v1358 = vadd.f32 %v1245, %v1357
        %v1359 = vpop.f32.mrb[0].mxu0
        %v1360 = vadd.f32 %v1247, %v1359
        %v1361 = vpop.f32.mrb[0].mxu0
        %v1362 = vadd.f32 %v1249, %v1361
        %v1363 = vpop.f32.mrb[0].mxu0
        %v1364 = vadd.f32 %v1251, %v1363
        %1365 = vmatprep.mubr.bf16.mxu0 %v771
        %1366 = vmatmul.mubr.bf16.gmra.mrb[0].mxu0 %v770
        %v1367 = vpop.f32.mrb[0].mxu0
        %v1368 = vadd.f32 %v1255, %v1367
        %v1369 = vpop.f32.mrb[0].mxu0
        %v1370 = vadd.f32 %v1257, %v1369
        %v1371 = vpop.f32.mrb[0].mxu0
        %v1372 = vadd.f32 %v1259, %v1371
        %v1373 = vpop.f32.mrb[0].mxu0
        %v1374 = vadd.f32 %v1261, %v1373
        %1375 = vmatprep.mubr.bf16.mxu0 %v775
        %1376 = vmatmul.mubr.bf16.gmra.mrb[0].mxu0 %v774
        %v1377 = vpop.f32.mrb[0].mxu0
        %v1378 = vadd.f32 %v1265, %v1377
        %v1379 = vpop.f32.mrb[0].mxu0
        %v1380 = vadd.f32 %v1267, %v1379
        %v1381 = vpop.f32.mrb[0].mxu0
        %v1382 = vadd.f32 %v1269, %v1381
        %v1383 = vpop.f32.mrb[0].mxu0
        %v1384 = vadd.f32 %v1271, %v1383
        %1385 = vmatprep.mubr.bf16.mxu0 %v779
        %1386 = vmatmul.mubr.bf16.gmra.mrb[0].mxu0 %v778
        %v1387 = vpop.f32.mrb[0].mxu0
        %v1388 = vadd.f32 %v1275, %v1387
        %v1389 = vpop.f32.mrb[0].mxu0
        %v1390 = vadd.f32 %v1277, %v1389
        %v1391 = vpop.f32.mrb[0].mxu0
        %v1392 = vadd.f32 %v1279, %v1391
        %v1393 = vpop.f32.mrb[0].mxu0
        %v1394 = vadd.f32 %v1281, %v1393
        %1395 = vmatprep.mubr.bf16.mxu0 %v783
        %1396 = vmatmul.mubr.bf16.gmra.mrb[0].mxu0 %v782
        %v1397 = vpop.f32.mrb[0].mxu0
        %v1398 = vadd.f32 %v1285, %v1397
        %v1399 = vpop.f32.mrb[0].mxu0
        %v1400 = vadd.f32 %v1287, %v1399
        %v1401 = vpop.f32.mrb[0].mxu0
        %v1402 = vadd.f32 %v1289, %v1401
        %v1403 = vpop.f32.mrb[0].mxu0
        %v1404 = vadd.f32 %v1291, %v1403
        %1405 = vdwg.mxu0
        %v1406 = vmax.f32 %v1328, 0.0
        %v1407 = vmax.f32 %v1330, 0.0
        %v1408 = vmax.f32 %v1332, 0.0
        %v1409 = vmax.f32 %v1334, 0.0
        %v1410 = vmax.f32 %v1338, 0.0
        %v1411 = vmax.f32 %v1340, 0.0
        %v1412 = vmax.f32 %v1342, 0.0
        %v1413 = vmax.f32 %v1344, 0.0
        %v1414 = vmax.f32 %v1348, 0.0
        %v1415 = vmax.f32 %v1350, 0.0
        %v1416 = vmax.f32 %v1352, 0.0
        %v1417 = vmax.f32 %v1354, 0.0
        %v1418 = vmax.f32 %v1358, 0.0
        %v1419 = vmax.f32 %v1360, 0.0
        %v1420 = vmax.f32 %v1362, 0.0
        %v1421 = vmax.f32 %v1364, 0.0
        %v1422 = vmax.f32 %v1368, 0.0
        %v1423 = vmax.f32 %v1370, 0.0
        %v1424 = vmax.f32 %v1372, 0.0
        %v1425 = vmax.f32 %v1374, 0.0
        %v1426 = vmax.f32 %v1378, 0.0
        %v1427 = vmax.f32 %v1380, 0.0
        %v1428 = vmax.f32 %v1382, 0.0
        %v1429 = vmax.f32 %v1384, 0.0
        %v1430 = vmax.f32 %v1388, 0.0
        %v1431 = vmax.f32 %v1390, 0.0
        %v1432 = vmax.f32 %v1392, 0.0
        %v1433 = vmax.f32 %v1394, 0.0
        %v1434 = vmax.f32 %v1398, 0.0
        %v1435 = vmax.f32 %v1400, 0.0
        %v1436 = vmax.f32 %v1402, 0.0
        %v1437 = vmax.f32 %v1404, 0.0
        %v1438 = vpack.c.bf16 %v1408, %v1406
        %v1439 = vpack.c.bf16 %v1409, %v1407
        %v1440 = vpack.c.bf16 %v1412, %v1410
        %v1441 = vpack.c.bf16 %v1413, %v1411
        %v1442 = vpack.c.bf16 %v1416, %v1414
        %v1443 = vpack.c.bf16 %v1417, %v1415
        %v1444 = vpack.c.bf16 %v1420, %v1418
        %v1445 = vpack.c.bf16 %v1421, %v1419
        %v1446 = vpack.c.bf16 %v1424, %v1422
        %v1447 = vpack.c.bf16 %v1425, %v1423
        %v1448 = vpack.c.bf16 %v1428, %v1426
        %v1449 = vpack.c.bf16 %v1429, %v1427
        %v1450 = vpack.c.bf16 %v1432, %v1430
        %v1451 = vpack.c.bf16 %v1433, %v1431
        %v1452 = vpack.c.bf16 %v1436, %v1434
        %v1453 = vpack.c.bf16 %v1437, %v1435
        %v1454 = vld [vmem:[%s5] sm:$0xf]
        %v1455 = vld [vmem:[%s5 + $0x4] sm:$0xf]
        %v1456 = vld [vmem:[%s5 + $0x8] sm:$0xf]
        %v1457 = vld [vmem:[%s5 + $0xc] sm:$0xf]
        %v1458 = vld [vmem:[%s5 + $0x10] sm:$0xf]
        %v1459 = vld [vmem:[%s5 + $0x14] sm:$0xf]
        %v1460 = vld [vmem:[%s5 + $0x18] sm:$0xf]
        %v1461 = vld [vmem:[%s5 + $0x1c] sm:$0xf]
        %v1462 = vld [vmem:[%s5 + $0x20] sm:$0xf]
        %v1463 = vld [vmem:[%s5 + $0x24] sm:$0xf]
        %v1464 = vld [vmem:[%s5 + $0x28] sm:$0xf]
        %v1465 = vld [vmem:[%s5 + $0x2c] sm:$0xf]
        %v1466 = vld [vmem:[%s5 + $0x30] sm:$0xf]
        %v1467 = vld [vmem:[%s5 + $0x34] sm:$0xf]
        %v1468 = vld [vmem:[%s5 + $0x38] sm:$0xf]
        %v1469 = vld [vmem:[%s5 + $0x3c] sm:$0xf]
        %v1470 = vld [vmem:[%s5 + $0x40] sm:$0xf]
        %v1471 = vld [vmem:[%s5 + $0x44] sm:$0xf]
        %v1472 = vld [vmem:[%s5 + $0x48] sm:$0xf]
        %v1473 = vld [vmem:[%s5 + $0x4c] sm:$0xf]
        %v1474 = vld [vmem:[%s5 + $0x50] sm:$0xf]
        %v1475 = vld [vmem:[%s5 + $0x54] sm:$0xf]
        %v1476 = vld [vmem:[%s5 + $0x58] sm:$0xf]
        %v1477 = vld [vmem:[%s5 + $0x5c] sm:$0xf]
        %v1478 = vld [vmem:[%s5 + $0x60] sm:$0xf]
        %v1479 = vld [vmem:[%s5 + $0x64] sm:$0xf]
        %v1480 = vld [vmem:[%s5 + $0x68] sm:$0xf]
        %v1481 = vld [vmem:[%s5 + $0x6c] sm:$0xf]
        %v1482 = vld [vmem:[%s5 + $0x70] sm:$0xf]
        %v1483 = vld [vmem:[%s5 + $0x74] sm:$0xf]
        %v1484 = vld [vmem:[%s5 + $0x78] sm:$0xf]
        %v1485 = vld [vmem:[%s5 + $0x7c] sm:$0xf]
        %v1486 = vld [vmem:[%s6] sm:$0x1]
        %v1488 = vlaneseq
        %v1489 = vshrl.u32 %v1488, 7
        %v1490 = vsub.s32 0, %v1489
        %v1491 = vrot.slane %v1486, %v1490
        %v1525 = vunpack.c.l.b16 %v1454
        %v1526 = vunpack.c.l.b16 %v1455
        %v1527 = vunpack.c.l.b16 %v1456
        %v1528 = vunpack.c.l.b16 %v1457
        %v1529 = vunpack.c.l.b16 %v1458
        %v1530 = vunpack.c.l.b16 %v1459
        %v1531 = vunpack.c.l.b16 %v1460
        %v1532 = vunpack.c.l.b16 %v1461
        %v1533 = vunpack.c.l.b16 %v1462
        %v1534 = vunpack.c.l.b16 %v1463
        %v1535 = vunpack.c.l.b16 %v1464
        %v1536 = vunpack.c.l.b16 %v1465
        %v1537 = vunpack.c.l.b16 %v1466
        %v1538 = vunpack.c.l.b16 %v1467
        %v1539 = vunpack.c.l.b16 %v1468
        %v1540 = vunpack.c.l.b16 %v1469
        %v1541 = vunpack.c.l.b16 %v1470
        %v1542 = vunpack.c.l.b16 %v1471
        %v1543 = vunpack.c.l.b16 %v1472
        %v1544 = vunpack.c.l.b16 %v1473
        %v1545 = vunpack.c.l.b16 %v1474
        %v1546 = vunpack.c.l.b16 %v1475
        %v1547 = vunpack.c.l.b16 %v1476
        %v1548 = vunpack.c.l.b16 %v1477
        %v1549 = vunpack.c.l.b16 %v1478
        %v1550 = vunpack.c.l.b16 %v1479
        %v1551 = vunpack.c.l.b16 %v1480
        %v1552 = vunpack.c.l.b16 %v1481
        %v1553 = vunpack.c.l.b16 %v1482
        %v1554 = vunpack.c.l.b16 %v1483
        %v1555 = vunpack.c.l.b16 %v1484
        %v1556 = vunpack.c.l.b16 %v1485
        %v1557 = vpack.c.b16 %v1526, %v1525
        %v1558 = vpack.c.b16 %v1528, %v1527
        %v1559 = vpack.c.b16 %v1530, %v1529
        %v1560 = vpack.c.b16 %v1532, %v1531
        %v1561 = vpack.c.b16 %v1534, %v1533
        %v1562 = vpack.c.b16 %v1536, %v1535
        %v1563 = vpack.c.b16 %v1538, %v1537
        %v1564 = vpack.c.b16 %v1540, %v1539
        %v1565 = vpack.c.b16 %v1542, %v1541
        %v1566 = vpack.c.b16 %v1544, %v1543
        %v1567 = vpack.c.b16 %v1546, %v1545
        %v1568 = vpack.c.b16 %v1548, %v1547
        %v1569 = vpack.c.b16 %v1550, %v1549
        %v1570 = vpack.c.b16 %v1552, %v1551
        %v1571 = vpack.c.b16 %v1554, %v1553
        %v1572 = vpack.c.b16 %v1556, %v1555
        %1589 = vmatprep.subr.bf16.mxu0 0
        %1590 = vmatpush1.bf16.msra.mxu0 %v1557
        %1591 = vmatprep.subr.bf16.mxu0 0
        %1592 = vmatpush1.bf16.msra.mxu0 %v1558
        %1593 = vmatprep.subr.bf16.mxu0 0
        %1594 = vmatpush1.bf16.msra.mxu0 %v1559
        %1595 = vmatprep.subr.bf16.mxu0 0
        %1596 = vmatpush1.bf16.msra.mxu0 %v1560
        %1597 = vmatprep.subr.bf16.mxu0 0
        %1598 = vmatpush1.bf16.msra.mxu0 %v1561
        %1599 = vmatprep.subr.bf16.mxu0 0
        %1600 = vmatpush1.bf16.msra.mxu0 %v1562
        %1601 = vmatprep.subr.bf16.mxu0 0
        %1602 = vmatpush1.bf16.msra.mxu0 %v1563
        %1603 = vmatprep.subr.bf16.mxu0 0
        %1604 = vmatpush1.bf16.msra.mxu0 %v1564
        %1605 = vmatprep.subr.bf16.mxu0 0
        %1606 = vmatpush1.bf16.msra.mxu0 %v1565
        %1607 = vmatprep.subr.bf16.mxu0 0
        %1608 = vmatpush1.bf16.msra.mxu0 %v1566
        %1609 = vmatprep.subr.bf16.mxu0 0
        %1610 = vmatpush1.bf16.msra.mxu0 %v1567
        %1611 = vmatprep.subr.bf16.mxu0 0
        %1612 = vmatpush1.bf16.msra.mxu0 %v1568
        %1613 = vmatprep.subr.bf16.mxu0 0
        %1614 = vmatpush1.bf16.msra.mxu0 %v1569
        %1615 = vmatprep.subr.bf16.mxu0 0
        %1616 = vmatpush1.bf16.msra.mxu0 %v1570
        %1617 = vmatprep.subr.bf16.mxu0 0
        %1618 = vmatpush1.bf16.msra.mxu0 %v1571
        %1619 = vmatprep.subr.bf16.mxu0 0
        %1620 = vmatpush1.bf16.msra.mxu0 %v1572
        %1621 = vmatprep.mubr.bf16.mxu0 %v1439
        %1622 = vmatmul.mubr.bf16.gmra.mrb[0].mxu0 %v1438
        %v1623 = vpop.f32.mrb[0].mxu0
        %v1624 = vadd.f32 %v1491, %v1623
        %v1625 = vpop.f32.mrb[0].mxu0
        %v1626 = vpop.f32.mrb[0].mxu0
        %v1627 = vadd.f32 %v1491, %v1626
        %v1628 = vpop.f32.mrb[0].mxu0
        %1629 = vmatprep.mubr.bf16.mxu0 %v1441
        %1630 = vmatmul.mubr.bf16.gmra.mrb[0].mxu0 %v1440
        %v1631 = vpop.f32.mrb[0].mxu0
        %v1632 = vadd.f32 %v1491, %v1631
        %v1633 = vpop.f32.mrb[0].mxu0
        %v1634 = vpop.f32.mrb[0].mxu0
        %v1635 = vadd.f32 %v1491, %v1634
        %v1636 = vpop.f32.mrb[0].mxu0
        %1637 = vmatprep.mubr.bf16.mxu0 %v1443
        %1638 = vmatmul.mubr.bf16.gmra.mrb[0].mxu0 %v1442
        %v1639 = vpop.f32.mrb[0].mxu0
        %v1640 = vadd.f32 %v1491, %v1639
        %v1641 = vpop.f32.mrb[0].mxu0
        %v1642 = vpop.f32.mrb[0].mxu0
        %v1643 = vadd.f32 %v1491, %v1642
        %v1644 = vpop.f32.mrb[0].mxu0
        %1645 = vmatprep.mubr.bf16.mxu0 %v1445
        %1646 = vmatmul.mubr.bf16.gmra.mrb[0].mxu0 %v1444
        %v1647 = vpop.f32.mrb[0].mxu0
        %v1648 = vadd.f32 %v1491, %v1647
        %v1649 = vpop.f32.mrb[0].mxu0
        %v1650 = vpop.f32.mrb[0].mxu0
        %v1651 = vadd.f32 %v1491, %v1650
        %v1652 = vpop.f32.mrb[0].mxu0
        %1653 = vmatprep.mubr.bf16.mxu0 %v1447
        %1654 = vmatmul.mubr.bf16.gmra.mrb[0].mxu0 %v1446
        %v1655 = vpop.f32.mrb[0].mxu0
        %v1656 = vadd.f32 %v1491, %v1655
        %v1657 = vpop.f32.mrb[0].mxu0
        %v1658 = vpop.f32.mrb[0].mxu0
        %v1659 = vadd.f32 %v1491, %v1658
        %v1660 = vpop.f32.mrb[0].mxu0
        %1661 = vmatprep.mubr.bf16.mxu0 %v1449
        %1662 = vmatmul.mubr.bf16.gmra.mrb[0].mxu0 %v1448
        %v1663 = vpop.f32.mrb[0].mxu0
        %v1664 = vadd.f32 %v1491, %v1663
        %v1665 = vpop.f32.mrb[0].mxu0
        %v1666 = vpop.f32.mrb[0].mxu0
        %v1667 = vadd.f32 %v1491, %v1666
        %v1668 = vpop.f32.mrb[0].mxu0
        %1669 = vmatprep.mubr.bf16.mxu0 %v1451
        %1670 = vmatmul.mubr.bf16.gmra.mrb[0].mxu0 %v1450
        %v1671 = vpop.f32.mrb[0].mxu0
        %v1672 = vadd.f32 %v1491, %v1671
        %v1673 = vpop.f32.mrb[0].mxu0
        %v1674 = vpop.f32.mrb[0].mxu0
        %v1675 = vadd.f32 %v1491, %v1674
        %v1676 = vpop.f32.mrb[0].mxu0
        %1677 = vmatprep.mubr.bf16.mxu0 %v1453
        %1678 = vmatmul.mubr.bf16.gmra.mrb[0].mxu0 %v1452
        %v1679 = vpop.f32.mrb[0].mxu0
        %v1680 = vadd.f32 %v1491, %v1679
        %v1681 = vpop.f32.mrb[0].mxu0
        %v1682 = vpop.f32.mrb[0].mxu0
        %v1683 = vadd.f32 %v1491, %v1682
        %v1684 = vpop.f32.mrb[0].mxu0
        %1685 = vdwg.mxu0
        %1686 = vst [vmem:[%s302] sm:$0xff] %v1624
        %1687 = vst [vmem:[%s302 + $0x8] sm:$0xff] %v1627
        %1688 = vst [vmem:[%s302 + $0x10] sm:$0xff] %v1632
        %1689 = vst [vmem:[%s302 + $0x18] sm:$0xff] %v1635
        %1690 = vst [vmem:[%s302 + $0x20] sm:$0xff] %v1640
        %1691 = vst [vmem:[%s302 + $0x28] sm:$0xff] %v1643
        %1692 = vst [vmem:[%s302 + $0x30] sm:$0xff] %v1648
        %1693 = vst [vmem:[%s302 + $0x38] sm:$0xff] %v1651
        %1694 = vst [vmem:[%s302 + $0x40] sm:$0xff] %v1656
        %1695 = vst [vmem:[%s302 + $0x48] sm:$0xff] %v1659
        %1696 = vst [vmem:[%s302 + $0x50] sm:$0xff] %v1664
        %1697 = vst [vmem:[%s302 + $0x58] sm:$0xff] %v1667
        %1698 = vst [vmem:[%s302 + $0x60] sm:$0xff] %v1672
        %1699 = vst [vmem:[%s302 + $0x68] sm:$0xff] %v1675
        %1700 = vst [vmem:[%s302 + $0x70] sm:$0xff] %v1680
        %1701 = vst [vmem:[%s302 + $0x78] sm:$0xff] %v1683
        %s1702 = sand.u32 %s183, 1
        %s1703 = scalar_lea.sflag [#allocation4], %s1702
        %s1704 = sand.u32 %s183, 1
        %s1705 = smul.addr %s1704, 128
        %s1706 = scalar_lea.vmem [#allocation7], %s1705
        // Predicated region
        $region57: #{tpu_custom_call.1} parent=47 // pred_check
          %p1707 = pneg %p193
        $region58: #{tpu_custom_call.1} parent=47 // pred_check_branch
          %1709 = sbr.rel (%p1707) target = $region60
        $region59: #{tpu_custom_call.1} parent=47 // pred_region
          %s1710 = smul.u32 16, %s23
          %s1712 = ssub.s32 2048, 2048
          %1713 = vsyncadd %s1703, %s1712
          %s1714 = smul.addr %s1710, 128
          %s1715 = scalar_lea.hbm %s7, %s1714
          %s1716 = sshll.u32 %s1706, 4
          %s1717 = int_to_ptr.vmem [resolvable:$true] %s1716
          %1722 = dma.vmem_to_hbm [thread:$0]  %s1717, 2048, %s1715, %s1703, 128, 128, 8
        $region60: #{tpu_custom_call.1} parent=47 // pred_fallthru
          _
      $region48: #{tpu_custom_call.1} parent=5 // pred_fallthru
        _
      %p1723 = scmp.le.s32.totalorder 2, %s18
      // Predicated region
      $region61: #{tpu_custom_call.1} parent=5 // pred_check
        %p1724 = pneg %p1723
      $region62: #{tpu_custom_call.1} parent=5 // pred_check_branch
        %1726 = sbr.rel (%p1724) target = $region64
      $region63: #{tpu_custom_call.1} parent=5 // pred_region
        %s1727 = ssub.s32 %s18, 2
        // Predicated region
        $region65: #{tpu_custom_call.1} parent=63 // pred_check
          %p1728 = pneg %p199
        $region66: #{tpu_custom_call.1} parent=63 // pred_check_branch
          %1730 = sbr.rel (%p1728) target = $region68
        $region67: #{tpu_custom_call.1} parent=63 // pred_region
          %s1731 = sand.u32 %s184, 1
          %s1732 = scalar_lea.sflag [#allocation4], %s1731
          %s1733 = sand.u32 %s184, 1
          %s1734 = smul.addr %s1733, 128
          %s1735 = scalar_lea.vmem [#allocation7], %s1734
          %1736 = dma.done %s1732, 2048
        $region68: #{tpu_custom_call.1} parent=63 // pred_fallthru
          _
      $region64: #{tpu_custom_call.1} parent=5 // pred_fallthru
        _
    $region6: #{tpu_custom_call.1} parent=1 // loop_footer
      %s22 = sadd.s32 1, %s18
    $region7: #{tpu_custom_call.1} parent=1 // loop_footer_branch
      %17 = sbr.rel target = $region3
    $region8: #{tpu_custom_call.1} parent=1 // loop_exit
      _
    %1737 = vsyncpa [#allocation3], 1
    %s1738 = scalar_lea.sflag [#allocation3], 1
    %1739 = vsyncpa %s1738, 1
    %1740 = vsyncpa [#allocation6], 1
    %1741 = vsyncpa [#allocation4], 1
    %s1742 = scalar_lea.sflag [#allocation4], 1
    %1743 = vsyncpa %s1742, 1

</llo_original>
